<compile_context>
chip_gen: v6e
topology: v6e:2x2x1
jax: 0.10.0
libtpu: 0.0.40
codegen_flags: <defaults>
</compile_context>

<pallas_src>
import functools

import jax
import jax.numpy as jnp
from jax.experimental import pallas as pl
from jax.experimental.pallas import tpu as pltpu

LANE = 128  # TPU vreg lane width


def _round_up(n, m):
    return (n + m - 1) // m * m


def _pad_to(a, shape):
    pads = [(0, t - s) for s, t in zip(a.shape, shape)]
    return jnp.pad(a, pads)


def _default_batch_tile():
    """Generation-aware batch tile.

    Dual-TensorCore chips (v7x): 128-row tiles so each core gets one grid step.
    Single-TC chips (v5e/v6e): one 256-row tile (grid=(1,)) — a second grid
    step would just be sequential per-step overhead.
    """
    try:
        kind = jax.devices()[0].device_kind.lower()
    except Exception:
        kind = ""
    dual_tc = ("v7" in kind) or ("7x" in kind)
    return 128 if dual_tc else 256


# ---------------------------------------------------------------------------
# Kernel: one batch tile, weights resident in VMEM, argmax epilogue fused.
# ---------------------------------------------------------------------------
def _mlp_actor_kernel(num_actions, x_ref, w1_ref, b1_ref, w2_ref, b2_ref,
                      w3_ref, b3_ref, logits_ref, idx_ref):
    # f32 -> bf16 cast folded into the kernel (VPU; essentially free).
    x = x_ref[...].astype(jnp.bfloat16)                               # (TB, D)
    h1 = jnp.dot(x, w1_ref[...], preferred_element_type=jnp.float32) + b1_ref[...]
    h1 = jnp.maximum(h1, 0.0).astype(jnp.bfloat16)                    # ReLU, re-pack for MXU
    h2 = jnp.dot(h1, w2_ref[...], preferred_element_type=jnp.float32) + b2_ref[...]
    h2 = jnp.maximum(h2, 0.0).astype(jnp.bfloat16)                    # ReLU
    logits = jnp.dot(h2, w3_ref[...],
                     preferred_element_type=jnp.float32) + b3_ref[...]  # (TB, NP) f32

    # bf16 writeback: halves the only non-trivial HBM write.
    logits_ref[...] = logits.astype(logits_ref.dtype)

    # Fused CombinedModel argmax: mask zero-padded lanes and the critic lane
    # with -inf so they can never win; first-occurrence tie-break like argmax.
    lane = jax.lax.broadcasted_iota(jnp.int32, logits.shape, 1)
    masked = jnp.where(lane < num_actions, logits, -jnp.inf)
    row_max = jnp.max(masked, axis=1, keepdims=True)
    first_hit = jnp.where(masked == row_max, lane, logits.shape[1])
    idx_ref[...] = jnp.min(first_hit, axis=1, keepdims=True).astype(jnp.int32)


# ---------------------------------------------------------------------------
# One-time parameter prep: pad lane dims to 128, cast matmul operands to bf16,
# fold the critic head into the padded lane `num_actions` of w3/b3.
# Zero padding keeps the padded hidden lanes exactly 0 through ReLU, so they
# contribute nothing to downstream layers.
# ---------------------------------------------------------------------------
def prepare_params(w1, b1, w2, b2, w3, b3, wv=None, bv=None):
    d_obs, h1 = w1.shape
    _, h2 = w2.shape
    _, n_act = w3.shape
    H1 = _round_up(h1, LANE)
    H2 = _round_up(h2, LANE)
    NP = _round_up(n_act + 1, LANE) if wv is not None else _round_up(n_act, LANE)

    w1p = _pad_to(w1, (d_obs, H1)).astype(jnp.bfloat16)
    b1p = _pad_to(b1.reshape(1, -1), (1, H1)).astype(jnp.float32)
    w2p = _pad_to(w2, (H1, H2)).astype(jnp.bfloat16)
    b2p = _pad_to(b2.reshape(1, -1), (1, H2)).astype(jnp.float32)

    w3_full = jnp.zeros((h2, NP), jnp.float32).at[:, :n_act].set(w3)
    b3_full = jnp.zeros((1, NP), jnp.float32).at[:, :n_act].set(b3.reshape(1, -1))
    if wv is not None:
        # Critic head rides in an otherwise-dead MXU lane: zero extra FLOPs.
        w3_full = w3_full.at[:, n_act:n_act + 1].set(wv.reshape(h2, 1))
        b3_full = b3_full.at[:, n_act].set(jnp.reshape(bv, ()))
    w3p = _pad_to(w3_full, (H2, NP)).astype(jnp.bfloat16)
    b3p = b3_full.astype(jnp.float32)
    return (w1p, b1p, w2p, b2p, w3p, b3p), n_act


# ---------------------------------------------------------------------------
# Wrapper: batch-tiled pallas_call, weights resident across the batch grid.
# Returns (logits [B, num_actions], argmax indices [B], value [B]).
# ---------------------------------------------------------------------------
def woodblock_agent_forward(x, params, num_actions, *, tb=None):
    w1, b1, w2, b2, w3, b3 = params
    B, d_obs = x.shape
    n_pad = w3.shape[1]

    if tb is None:
        tb = _default_batch_tile()
    tb = min(tb, _round_up(B, 16))           # bf16 packs 16 sublanes per vreg
    B_pad = _round_up(B, tb)
    if B_pad != B:
        # Rare path (only when B is not a tile multiple); demo uses B % tb == 0.
        x = jnp.pad(x, ((0, B_pad - B), (0, 0)))

    grid = (B_pad // tb,)

    flops = 2 * B_pad * (d_obs * w1.shape[1]
                         + w2.shape[0] * w2.shape[1]
                         + w3.shape[0] * n_pad)
    bytes_accessed = int(
        B_pad * d_obs * 4
        + sum(int(a.size) * a.dtype.itemsize for a in (w1, b1, w2, b2, w3, b3))
        + B_pad * n_pad * 2      # bf16 logits out
        + B_pad * 4              # int32 indices out
    )

    # NOTE: weight BlockSpecs keep the default double-buffering; at these sizes
    # (<100 KiB total) single-buffering (pl.Buffered(1)) buys nothing.
    logits_pad, idx_pad = pl.pallas_call(
        functools.partial(_mlp_actor_kernel, num_actions),
        out_shape=(
            jax.ShapeDtypeStruct((B_pad, n_pad), jnp.bfloat16),
            jax.ShapeDtypeStruct((B_pad, 1), jnp.int32),
        ),
        grid=grid,
        in_specs=[
            # x: tiled over batch, full (small) feature lane dim, f32 in HBM.
            pl.BlockSpec((tb, d_obs), lambda i: (i, 0)),
            # weights / biases: constant index_map -> stay resident in VMEM.
            pl.BlockSpec(w1.shape, lambda i: (0, 0)),
            pl.BlockSpec(b1.shape, lambda i: (0, 0)),
            pl.BlockSpec(w2.shape, lambda i: (0, 0)),
            pl.BlockSpec(b2.shape, lambda i: (0, 0)),
            pl.BlockSpec(w3.shape, lambda i: (0, 0)),
            pl.BlockSpec(b3.shape, lambda i: (0, 0)),
        ],
        out_specs=(
            pl.BlockSpec((tb, n_pad), lambda i: (i, 0)),
            pl.BlockSpec((tb, 1), lambda i: (i, 0)),
        ),
        compiler_params=pltpu.CompilerParams(
            dimension_semantics=("parallel",)),
        cost_estimate=pl.CostEstimate(
            flops=flops, transcendentals=0, bytes_accessed=bytes_accessed),
    )(x, w1, b1, w2, b2, w3, b3)

    # Strip batch / lane padding; critic value lives in lane `num_actions`.
    logits = logits_pad[:B, :num_actions]
    indices = idx_pad[:B, 0]
    value = logits_pad[:B, num_actions]      # value_function(), free
    return logits, indices, value


def _init_linear(key, fan_in, fan_out):
    # Mimics nn.Linear's uniform(-1/sqrt(fan_in), 1/sqrt(fan_in)),
    # stored already transposed to (in, out).
    kw, kb = jax.random.split(key)
    bound = 1.0 / jnp.sqrt(jnp.float32(fan_in))
    w = jax.random.uniform(kw, (fan_in, fan_out), jnp.float32, -bound, bound)
    b = jax.random.uniform(kb, (1, fan_out), jnp.float32, -bound, bound)
    return w, b


if __name__ == "__main__":
    # Shapes consistent with the module (flat obs, two fcnet_hiddens, discrete
    # action head); batch sized so the kernel isn't pure launch overhead and
    # both v7x TensorCores get a tile.
    B, OBS_DIM = 256, 32
    HIDDENS = [64, 64]
    NUM_ACTIONS = 16

    key = jax.random.PRNGKey(0)
    k_x, k1, k2, k3, k4 = jax.random.split(key, 5)

    x = jax.random.normal(k_x, (B, OBS_DIM), jnp.float32)   # input_dict["obs"].float()
    w1, b1 = _init_linear(k1, OBS_DIM, HIDDENS[0])           # shared_fc Linear 1
    w2, b2 = _init_linear(k2, HIDDENS[0], HIDDENS[1])        # shared_fc Linear 2
    w3, b3 = _init_linear(k3, HIDDENS[1], NUM_ACTIONS)       # actor head
    wv, bv = _init_linear(k4, HIDDENS[1], 1)                 # critic head

    params, n_act = prepare_params(w1, b1, w2, b2, w3, b3, wv, bv)  # pad + bf16, once

    logits, indices, value = woodblock_agent_forward(x, params, n_act)
    logits, indices, value = jax.block_until_ready((logits, indices, value))
    assert logits.shape == (B, NUM_ACTIONS)
    assert indices.shape == (B,)
    assert value.shape == (B,)

    # Pure-JAX reference with identical bf16-operand / f32-accumulate math.
    xb = x.astype(jnp.bfloat16)
    h = jnp.maximum(
        jnp.dot(xb, w1.astype(jnp.bfloat16), preferred_element_type=jnp.float32) + b1, 0.0
    ).astype(jnp.bfloat16)
    h = jnp.maximum(
        jnp.dot(h, w2.astype(jnp.bfloat16), preferred_element_type=jnp.float32) + b2, 0.0
    ).astype(jnp.bfloat16)
    ref_logits = jnp.dot(h, w3.astype(jnp.bfloat16), preferred_element_type=jnp.float32) + b3
    ref_value = (jnp.dot(h, wv.astype(jnp.bfloat16),
                         preferred_element_type=jnp.float32) + bv)[:, 0]
    ref_idx = jnp.argmax(ref_logits, axis=1).astype(jnp.int32)

    assert jnp.allclose(logits.astype(jnp.float32), ref_logits, atol=2e-2, rtol=2e-2)
    assert jnp.allclose(value.astype(jnp.float32), ref_value, atol=2e-2, rtol=2e-2)
    assert jnp.array_equal(indices, ref_idx)

    # Loose sanity check vs. the full-f32 reference (bf16 rounding only).
    hf = jnp.maximum(x @ w1 + b1, 0.0)
    hf = jnp.maximum(hf @ w2 + b2, 0.0)
    ref_f32 = hf @ w3 + b3
    assert jnp.allclose(logits.astype(jnp.float32), ref_f32, atol=6e-2, rtol=6e-2)

    # TODO(synk): state / seq_lens in forward() are pass-through Python values,
    # not tensor ops, so they stay in the wrapper (nothing to lower).

    print("KERNEL_OK")
</pallas_src>

<mosaic_0001>
module attributes {stable_mosaic.version = 11 : i64} {
  func.func @_mlp_actor_kernel(%arg0: i32, %arg1: memref<256x32xf32, #tpu.memory_space<vmem>>, %arg2: memref<32x128xbf16, #tpu.memory_space<vmem>>, %arg3: memref<1x128xf32, #tpu.memory_space<vmem>>, %arg4: memref<128x128xbf16, #tpu.memory_space<vmem>>, %arg5: memref<1x128xf32, #tpu.memory_space<vmem>>, %arg6: memref<128x128xbf16, #tpu.memory_space<vmem>>, %arg7: memref<1x128xf32, #tpu.memory_space<vmem>>, %arg8: memref<256x128xbf16, #tpu.memory_space<vmem>>, %arg9: memref<256x1xi32, #tpu.memory_space<vmem>>) attributes {dimension_semantics = [#tpu.dimension_semantics<parallel>], iteration_bounds = array<i64: 1>, scalar_prefetch = 0 : i64, scratch_operands = 0 : i64, tpu.core_type = #tpu.core_type<tc>, window_params = [{transform_indices = @transform_0, window_bounds = array<i64: 256, 32>}, {pipeline_mode = #tpu.pipeline_mode<synchronous>, transform_indices = @transform_1, window_bounds = array<i64: 32, 128>}, {pipeline_mode = #tpu.pipeline_mode<synchronous>, transform_indices = @transform_2, window_bounds = array<i64: 1, 128>}, {pipeline_mode = #tpu.pipeline_mode<synchronous>, transform_indices = @transform_3, window_bounds = array<i64: 128, 128>}, {pipeline_mode = #tpu.pipeline_mode<synchronous>, transform_indices = @transform_4, window_bounds = array<i64: 1, 128>}, {pipeline_mode = #tpu.pipeline_mode<synchronous>, transform_indices = @transform_5, window_bounds = array<i64: 128, 128>}, {pipeline_mode = #tpu.pipeline_mode<synchronous>, transform_indices = @transform_6, window_bounds = array<i64: 1, 128>}, {transform_indices = @transform_7, window_bounds = array<i64: 256, 128>}, {transform_indices = @transform_8, window_bounds = array<i64: 256, 1>}]} {
    %c0 = arith.constant 0 : index
    %c0_0 = arith.constant 0 : index
    %0 = vector.load %arg1[%c0, %c0_0] : memref<256x32xf32, #tpu.memory_space<vmem>>, vector<256x32xf32>
    %1 = arith.truncf %0 : vector<256x32xf32> to vector<256x32xbf16>
    %c0_1 = arith.constant 0 : index
    %c0_2 = arith.constant 0 : index
    %2 = vector.load %arg2[%c0_1, %c0_2] : memref<32x128xbf16, #tpu.memory_space<vmem>>, vector<32x128xbf16>
    %cst = arith.constant dense<0.000000e+00> : vector<256x128xf32>
    %3 = tpu.matmul %1, %2, %cst {dimension_numbers = #tpu.dot_dimension_numbers<[1], [0], [0], [1], [0, 0, 1, 1], [], []>} : vector<256x32xbf16>, vector<32x128xbf16>, vector<256x128xf32> -> vector<256x128xf32>
    %c0_3 = arith.constant 0 : index
    %c0_4 = arith.constant 0 : index
    %4 = vector.load %arg3[%c0_3, %c0_4] : memref<1x128xf32, #tpu.memory_space<vmem>>, vector<1x128xf32>
    %5 = vector.broadcast %4 : vector<1x128xf32> to vector<256x128xf32>
    %6 = arith.addf %3, %5 : vector<256x128xf32>
    %cst_5 = arith.constant 0.000000e+00 : f32
    %7 = vector.broadcast %cst_5 : f32 to vector<256x128xf32>
    %8 = arith.maximumf %6, %7 : vector<256x128xf32>
    %9 = arith.truncf %8 : vector<256x128xf32> to vector<256x128xbf16>
    %c0_6 = arith.constant 0 : index
    %c0_7 = arith.constant 0 : index
    %10 = vector.load %arg4[%c0_6, %c0_7] : memref<128x128xbf16, #tpu.memory_space<vmem>>, vector<128x128xbf16>
    %cst_8 = arith.constant dense<0.000000e+00> : vector<256x128xf32>
    %11 = tpu.matmul %9, %10, %cst_8 {dimension_numbers = #tpu.dot_dimension_numbers<[1], [0], [0], [1], [0, 0, 1, 1], [], []>} : vector<256x128xbf16>, vector<128x128xbf16>, vector<256x128xf32> -> vector<256x128xf32>
    %c0_9 = arith.constant 0 : index
    %c0_10 = arith.constant 0 : index
    %12 = vector.load %arg5[%c0_9, %c0_10] : memref<1x128xf32, #tpu.memory_space<vmem>>, vector<1x128xf32>
    %13 = vector.broadcast %12 : vector<1x128xf32> to vector<256x128xf32>
    %14 = arith.addf %11, %13 : vector<256x128xf32>
    %cst_11 = arith.constant 0.000000e+00 : f32
    %15 = vector.broadcast %cst_11 : f32 to vector<256x128xf32>
    %16 = arith.maximumf %14, %15 : vector<256x128xf32>
    %17 = arith.truncf %16 : vector<256x128xf32> to vector<256x128xbf16>
    %c0_12 = arith.constant 0 : index
    %c0_13 = arith.constant 0 : index
    %18 = vector.load %arg6[%c0_12, %c0_13] : memref<128x128xbf16, #tpu.memory_space<vmem>>, vector<128x128xbf16>
    %cst_14 = arith.constant dense<0.000000e+00> : vector<256x128xf32>
    %19 = tpu.matmul %17, %18, %cst_14 {dimension_numbers = #tpu.dot_dimension_numbers<[1], [0], [0], [1], [0, 0, 1, 1], [], []>} : vector<256x128xbf16>, vector<128x128xbf16>, vector<256x128xf32> -> vector<256x128xf32>
    %c0_15 = arith.constant 0 : index
    %c0_16 = arith.constant 0 : index
    %20 = vector.load %arg7[%c0_15, %c0_16] : memref<1x128xf32, #tpu.memory_space<vmem>>, vector<1x128xf32>
    %21 = vector.broadcast %20 : vector<1x128xf32> to vector<256x128xf32>
    %22 = arith.addf %19, %21 : vector<256x128xf32>
    %23 = arith.truncf %22 : vector<256x128xf32> to vector<256x128xbf16>
    %c0_17 = arith.constant 0 : index
    %c0_18 = arith.constant 0 : index
    %24 = vector.load %arg8[%c0_17, %c0_18] : memref<256x128xbf16, #tpu.memory_space<vmem>>, vector<256x128xbf16>
    tpu.vector_store %arg8[%c0_17, %c0_18], %23 {strides = array<i32>} : memref<256x128xbf16, #tpu.memory_space<vmem>>, vector<256x128xbf16>,
    %25 = tpu.iota {dimensions = array<i32: 1>} : vector<256x128xi32>
    %c16_i32 = arith.constant 16 : i32
    %26 = vector.broadcast %c16_i32 : i32 to vector<256x128xi32>
    %27 = arith.cmpi slt, %25, %26 : vector<256x128xi32>
    %cst_19 = arith.constant 0xFF800000 : f32
    %28 = vector.broadcast %cst_19 : f32 to vector<256x128xf32>
    %29 = arith.select %27, %22, %28 : vector<256x128xi1>, vector<256x128xf32>
    %cst_20 = arith.constant dense<0xFF800000> : vector<256xf32>
    %30 = vector.multi_reduction <maximumf>, %29, %cst_20 [1] : vector<256x128xf32> to vector<256xf32>
    %31 = vector.shape_cast %30 : vector<256xf32> to vector<256x1xf32>
    %32 = vector.broadcast %31 : vector<256x1xf32> to vector<256x128xf32>
    %33 = arith.cmpf oeq, %29, %32 : vector<256x128xf32>
    %c128_i32 = arith.constant 128 : i32
    %34 = vector.broadcast %c128_i32 : i32 to vector<256x128xi32>
    %35 = arith.select %33, %25, %34 : vector<256x128xi1>, vector<256x128xi32>
    %cst_21 = arith.constant dense<2147483647> : vector<256xi32>
    %36 = vector.multi_reduction <minsi>, %35, %cst_21 [1] : vector<256x128xi32> to vector<256xi32>
    %37 = vector.shape_cast %36 : vector<256xi32> to vector<256x1xi32>
    %c0_22 = arith.constant 0 : index
    %c0_23 = arith.constant 0 : index
    %38 = vector.load %arg9[%c0_22, %c0_23] : memref<256x1xi32, #tpu.memory_space<vmem>>, vector<256x1xi32>
    tpu.vector_store %arg9[%c0_22, %c0_23], %37 {strides = array<i32>} : memref<256x1xi32, #tpu.memory_space<vmem>>, vector<256x1xi32>,
    return
  }
  func.func @transform_0(%arg0: i32) -> (i32, i32) {
    %c0_i32 = arith.constant 0 : i32
    %c0_i32_0 = arith.constant 0 : i32
    return %arg0, %c0_i32 : i32, i32
  }
  func.func @transform_1(%arg0: i32) -> (i32, i32) {
    %c0_i32 = arith.constant 0 : i32
    %c0_i32_0 = arith.constant 0 : i32
    %c0_i32_1 = arith.constant 0 : i32
    return %c0_i32, %c0_i32_0 : i32, i32
  }
  func.func @transform_2(%arg0: i32) -> (i32, i32) {
    %c0_i32 = arith.constant 0 : i32
    %c0_i32_0 = arith.constant 0 : i32
    %c0_i32_1 = arith.constant 0 : i32
    return %c0_i32, %c0_i32_0 : i32, i32
  }
  func.func @transform_3(%arg0: i32) -> (i32, i32) {
    %c0_i32 = arith.constant 0 : i32
    %c0_i32_0 = arith.constant 0 : i32
    %c0_i32_1 = arith.constant 0 : i32
    return %c0_i32, %c0_i32_0 : i32, i32
  }
  func.func @transform_4(%arg0: i32) -> (i32, i32) {
    %c0_i32 = arith.constant 0 : i32
    %c0_i32_0 = arith.constant 0 : i32
    %c0_i32_1 = arith.constant 0 : i32
    return %c0_i32, %c0_i32_0 : i32, i32
  }
  func.func @transform_5(%arg0: i32) -> (i32, i32) {
    %c0_i32 = arith.constant 0 : i32
    %c0_i32_0 = arith.constant 0 : i32
    %c0_i32_1 = arith.constant 0 : i32
    return %c0_i32, %c0_i32_0 : i32, i32
  }
  func.func @transform_6(%arg0: i32) -> (i32, i32) {
    %c0_i32 = arith.constant 0 : i32
    %c0_i32_0 = arith.constant 0 : i32
    %c0_i32_1 = arith.constant 0 : i32
    return %c0_i32, %c0_i32_0 : i32, i32
  }
  func.func @transform_7(%arg0: i32) -> (i32, i32) {
    %c0_i32 = arith.constant 0 : i32
    %c0_i32_0 = arith.constant 0 : i32
    return %arg0, %c0_i32 : i32, i32
  }
  func.func @transform_8(%arg0: i32) -> (i32, i32) {
    %c0_i32 = arith.constant 0 : i32
    %c0_i32_0 = arith.constant 0 : i32
    return %arg0, %c0_i32 : i32, i32
  }
}

</mosaic_0001>

<llo_original>
// kernel: tpu_custom_call.1
$region0: #{tpu_custom_call.1}
  #allocation0 [shape = 'u32[]', space=smem, size = 0x4, offset = 0x4, fixed_abs, tag = 'smem constant byte address 0x4 - core index']
  #allocation1 [shape = 'u32[144,128]{1,0:T(1,128)}', space=vmem, size = 0x12000, scoped, tag = 'internal scratch']
  %s0 = inlined_call_operand.vmem [shape: f32[256,32], index: 0, kind: input, shape index: {}]
  %s1 = inlined_call_operand.vmem [shape: bf16[32,128], index: 1, kind: input, shape index: {}]
  %s2 = inlined_call_operand.vmem [shape: f32[1,128], index: 2, kind: input, shape index: {}]
  %s3 = inlined_call_operand.vmem [shape: bf16[128,128], index: 3, kind: input, shape index: {}]
  %s4 = inlined_call_operand.vmem [shape: f32[1,128], index: 4, kind: input, shape index: {}]
  %s5 = inlined_call_operand.vmem [shape: bf16[128,128], index: 5, kind: input, shape index: {}]
  %s6 = inlined_call_operand.vmem [shape: f32[1,128], index: 6, kind: input, shape index: {}]
  %s7 = inlined_call_operand.hbm [shape: bf16[256,128], index: 7, kind: output, shape index: {0}]
  %s8 = inlined_call_operand.vmem [shape: s32[256,1], index: 8, kind: output, shape index: {1}]
  %9 = xla_tuple %s7, %s8
  %s10 = sld [smem:[#allocation0]]
  $region46: #{tpu_custom_call.1} parent=0
    _
  %s12 = ssub.s32 1, %s10
  %s13 = scalar_select 0, %s12, %s10
  $region1: #{tpu_custom_call.1} parent=0
    #allocation2 [shape = 'u8[65536]{0}', space=vmem, size = 0x10000, scoped, tag = 'output window, operand 0, single buffered']
    #allocation3 [shape = 's32[1]{0}', space=sflag, size = 0x4, scoped, tag = 'scoped memory for tpu_custom_call.1']
    %14 = vsyncpa [#allocation3], 0
    // Predicated region
    $region2: #{tpu_custom_call.1} parent=1 // pred_check
      _
    $region3: #{tpu_custom_call.1} parent=1 // pred_check_branch
      %16 = sbr.rel (0) target = $region5
    $region4: #{tpu_custom_call.1} parent=1 // pred_region
      _
    $region5: #{tpu_custom_call.1} parent=1 // pred_fallthru
      _
    // Predicated region
    $region6: #{tpu_custom_call.1} parent=1 // pred_check
      _
    $region7: #{tpu_custom_call.1} parent=1 // pred_check_branch
      %18 = sbr.rel (0) target = $region9
    $region8: #{tpu_custom_call.1} parent=1 // pred_region
      _
    $region9: #{tpu_custom_call.1} parent=1 // pred_fallthru
      _
    // Predicated region
    $region10: #{tpu_custom_call.1} parent=1 // pred_check
      _
    $region11: #{tpu_custom_call.1} parent=1 // pred_check_branch
      %20 = sbr.rel (0) target = $region13
    $region12: #{tpu_custom_call.1} parent=1 // pred_region
      _
    $region13: #{tpu_custom_call.1} parent=1 // pred_fallthru
      _
    // Predicated region
    $region14: #{tpu_custom_call.1} parent=1 // pred_check
      _
    $region15: #{tpu_custom_call.1} parent=1 // pred_check_branch
      %22 = sbr.rel (0) target = $region17
    $region16: #{tpu_custom_call.1} parent=1 // pred_region
      _
    $region17: #{tpu_custom_call.1} parent=1 // pred_fallthru
      _
    // Predicated region
    $region18: #{tpu_custom_call.1} parent=1 // pred_check
      _
    $region19: #{tpu_custom_call.1} parent=1 // pred_check_branch
      %24 = sbr.rel (0) target = $region21
    $region20: #{tpu_custom_call.1} parent=1 // pred_region
      _
    $region21: #{tpu_custom_call.1} parent=1 // pred_fallthru
      _
    // Predicated region
    $region22: #{tpu_custom_call.1} parent=1 // pred_check
      _
    $region23: #{tpu_custom_call.1} parent=1 // pred_check_branch
      %26 = sbr.rel (0) target = $region25
    $region24: #{tpu_custom_call.1} parent=1 // pred_region
      _
    $region25: #{tpu_custom_call.1} parent=1 // pred_fallthru
      _
    // Predicated region
    $region26: #{tpu_custom_call.1} parent=1 // pred_check
      _
    $region27: #{tpu_custom_call.1} parent=1 // pred_check_branch
      %28 = sbr.rel (0) target = $region29
    $region28: #{tpu_custom_call.1} parent=1 // pred_region
      _
    $region29: #{tpu_custom_call.1} parent=1 // pred_fallthru
      _
    %v30 = vld [vmem:[%s0] sm:$0xff]
    %v31 = vld [vmem:[%s0 + $0x8] sm:$0xff]
    %v32 = vld [vmem:[%s0 + $0x10] sm:$0xff]
    %v33 = vld [vmem:[%s0 + $0x18] sm:$0xff]
    %v34 = vld [vmem:[%s0 + $0x20] sm:$0xff]
    %v35 = vld [vmem:[%s0 + $0x28] sm:$0xff]
    %v36 = vld [vmem:[%s0 + $0x30] sm:$0xff]
    %v37 = vld [vmem:[%s0 + $0x38] sm:$0xff]
    %v38 = vld [vmem:[%s0 + $0x40] sm:$0xff]
    %v39 = vld [vmem:[%s0 + $0x48] sm:$0xff]
    %v40 = vld [vmem:[%s0 + $0x50] sm:$0xff]
    %v41 = vld [vmem:[%s0 + $0x58] sm:$0xff]
    %v42 = vld [vmem:[%s0 + $0x60] sm:$0xff]
    %v43 = vld [vmem:[%s0 + $0x68] sm:$0xff]
    %v44 = vld [vmem:[%s0 + $0x70] sm:$0xff]
    %v45 = vld [vmem:[%s0 + $0x78] sm:$0xff]
    %v46 = vld [vmem:[%s0 + $0x80] sm:$0xff]
    %v47 = vld [vmem:[%s0 + $0x88] sm:$0xff]
    %v48 = vld [vmem:[%s0 + $0x90] sm:$0xff]
    %v49 = vld [vmem:[%s0 + $0x98] sm:$0xff]
    %v50 = vld [vmem:[%s0 + $0xa0] sm:$0xff]
    %v51 = vld [vmem:[%s0 + $0xa8] sm:$0xff]
    %v52 = vld [vmem:[%s0 + $0xb0] sm:$0xff]
    %v53 = vld [vmem:[%s0 + $0xb8] sm:$0xff]
    %v54 = vld [vmem:[%s0 + $0xc0] sm:$0xff]
    %v55 = vld [vmem:[%s0 + $0xc8] sm:$0xff]
    %v56 = vld [vmem:[%s0 + $0xd0] sm:$0xff]
    %v57 = vld [vmem:[%s0 + $0xd8] sm:$0xff]
    %v58 = vld [vmem:[%s0 + $0xe0] sm:$0xff]
    %v59 = vld [vmem:[%s0 + $0xe8] sm:$0xff]
    %v60 = vld [vmem:[%s0 + $0xf0] sm:$0xff]
    %v61 = vld [vmem:[%s0 + $0xf8] sm:$0xff]
    %v62 = vpack.c.bf16 %v31, %v30
    %v63 = vpack.c.bf16 %v33, %v32
    %v64 = vpack.c.bf16 %v35, %v34
    %v65 = vpack.c.bf16 %v37, %v36
    %v66 = vpack.c.bf16 %v39, %v38
    %v67 = vpack.c.bf16 %v41, %v40
    %v68 = vpack.c.bf16 %v43, %v42
    %v69 = vpack.c.bf16 %v45, %v44
    %v70 = vpack.c.bf16 %v47, %v46
    %v71 = vpack.c.bf16 %v49, %v48
    %v72 = vpack.c.bf16 %v51, %v50
    %v73 = vpack.c.bf16 %v53, %v52
    %v74 = vpack.c.bf16 %v55, %v54
    %v75 = vpack.c.bf16 %v57, %v56
    %v76 = vpack.c.bf16 %v59, %v58
    %v77 = vpack.c.bf16 %v61, %v60
    %v78 = vld [vmem:[%s1] sm:$0xf]
    %v79 = vld [vmem:[%s1 + $0x4] sm:$0xf]
    %v80 = vld [vmem:[%s1 + $0x8] sm:$0xf]
    %v81 = vld [vmem:[%s1 + $0xc] sm:$0xf]
    %v82 = vld [vmem:[%s2] sm:$0x1]
    %v84 = vlaneseq
    %v85 = vshrl.u32 %v84, 7
    %v86 = vsub.s32 0, %v85
    %v87 = vrot.slane %v82, %v86
    %v93 = vunpack.c.l.b16 %v78
    %v94 = vunpack.c.l.b16 %v79
    %v95 = vunpack.c.l.b16 %v80
    %v96 = vunpack.c.l.b16 %v81
    %v97 = vpack.c.b16 %v94, %v93
    %v98 = vpack.c.b16 %v96, %v95
    %vm101 = vcmask 261120
    %v103 = vsel %vm101, %v62, 0
    %v106 = vsel %vm101, %v63, 0
    %v109 = vsel %vm101, %v64, 0
    %v112 = vsel %vm101, %v65, 0
    %v115 = vsel %vm101, %v66, 0
    %v118 = vsel %vm101, %v67, 0
    %v121 = vsel %vm101, %v68, 0
    %v124 = vsel %vm101, %v69, 0
    %v127 = vsel %vm101, %v70, 0
    %v130 = vsel %vm101, %v71, 0
    %v133 = vsel %vm101, %v72, 0
    %v136 = vsel %vm101, %v73, 0
    %v139 = vsel %vm101, %v74, 0
    %v142 = vsel %vm101, %v75, 0
    %v145 = vsel %vm101, %v76, 0
    %v148 = vsel %vm101, %v77, 0
    %150 = vmatprep.subr.bf16.mxu0 0
    %151 = vmatpush1.bf16.msra.mxu0 0
    %152 = vmatprep.subr.bf16.mxu0 0
    %153 = vmatpush1.bf16.msra.mxu0 0
    %154 = vmatprep.subr.bf16.mxu0 0
    %155 = vmatpush1.bf16.msra.mxu0 0
    %156 = vmatprep.subr.bf16.mxu0 0
    %157 = vmatpush1.bf16.msra.mxu0 0
    %158 = vmatprep.subr.bf16.mxu0 0
    %159 = vmatpush1.bf16.msra.mxu0 0
    %160 = vmatprep.subr.bf16.mxu0 0
    %161 = vmatpush1.bf16.msra.mxu0 0
    %162 = vmatprep.subr.bf16.mxu0 0
    %163 = vmatpush1.bf16.msra.mxu0 %v98
    %164 = vmatprep.subr.bf16.mxu0 0
    %165 = vmatpush1.bf16.msra.mxu0 %v97
    %166 = vmatprep.subr.bf16.mxu0 0
    %167 = vmatpush2.bf16.msra.mxu0 0
    %168 = vmatprep.subr.bf16.mxu0 0
    %169 = vmatpush2.bf16.msra.mxu0 0
    %170 = vmatprep.subr.bf16.mxu0 0
    %171 = vmatpush2.bf16.msra.mxu0 0
    %172 = vmatprep.subr.bf16.mxu0 0
    %173 = vmatpush2.bf16.msra.mxu0 0
    %174 = vmatprep.subr.bf16.mxu0 0
    %175 = vmatpush2.bf16.msra.mxu0 0
    %176 = vmatprep.subr.bf16.mxu0 0
    %177 = vmatpush2.bf16.msra.mxu0 0
    %178 = vmatprep.subr.bf16.mxu0 0
    %179 = vmatpush2.bf16.msra.mxu0 0
    %180 = vmatprep.subr.bf16.mxu0 0
    %181 = vmatpush2.bf16.msra.mxu0 0
    %182 = vmatprep.mubr.bf16.mxu0 0
    %183 = vmatmul.mubr.bf16.gmra.mxu0 %v103
    %v184 = vpop.f32.mrf.mxu0
    %v185 = vadd.f32 %v87, %v184
    %v186 = vpop.f32.mrf.mxu0
    %v187 = vpop.f32.mrf.mxu0
    %v188 = vadd.f32 %v87, %v187
    %v189 = vpop.f32.mrf.mxu0
    %190 = vmatprep.mubr.bf16.mxu0 0
    %191 = vmatmul.mubr.bf16.gmra.mxu0 %v106
    %v192 = vpop.f32.mrf.mxu0
    %v193 = vadd.f32 %v87, %v192
    %v194 = vpop.f32.mrf.mxu0
    %v195 = vpop.f32.mrf.mxu0
    %v196 = vadd.f32 %v87, %v195
    %v197 = vpop.f32.mrf.mxu0
    %198 = vmatprep.mubr.bf16.mxu0 0
    %199 = vmatmul.mubr.bf16.gmra.mxu0 %v109
    %v200 = vpop.f32.mrf.mxu0
    %v201 = vadd.f32 %v87, %v200
    %v202 = vpop.f32.mrf.mxu0
    %v203 = vpop.f32.mrf.mxu0
    %v204 = vadd.f32 %v87, %v203
    %v205 = vpop.f32.mrf.mxu0
    %206 = vmatprep.mubr.bf16.mxu0 0
    %207 = vmatmul.mubr.bf16.gmra.mxu0 %v112
    %v208 = vpop.f32.mrf.mxu0
    %v209 = vadd.f32 %v87, %v208
    %v210 = vpop.f32.mrf.mxu0
    %v211 = vpop.f32.mrf.mxu0
    %v212 = vadd.f32 %v87, %v211
    %v213 = vpop.f32.mrf.mxu0
    %214 = vmatprep.mubr.bf16.mxu0 0
    %215 = vmatmul.mubr.bf16.gmra.mxu0 %v115
    %v216 = vpop.f32.mrf.mxu0
    %v217 = vadd.f32 %v87, %v216
    %v218 = vpop.f32.mrf.mxu0
    %v219 = vpop.f32.mrf.mxu0
    %v220 = vadd.f32 %v87, %v219
    %v221 = vpop.f32.mrf.mxu0
    %222 = vmatprep.mubr.bf16.mxu0 0
    %223 = vmatmul.mubr.bf16.gmra.mxu0 %v118
    %v224 = vpop.f32.mrf.mxu0
    %v225 = vadd.f32 %v87, %v224
    %v226 = vpop.f32.mrf.mxu0
    %v227 = vpop.f32.mrf.mxu0
    %v228 = vadd.f32 %v87, %v227
    %v229 = vpop.f32.mrf.mxu0
    %230 = vmatprep.mubr.bf16.mxu0 0
    %231 = vmatmul.mubr.bf16.gmra.mxu0 %v121
    %v232 = vpop.f32.mrf.mxu0
    %v233 = vadd.f32 %v87, %v232
    %v234 = vpop.f32.mrf.mxu0
    %v235 = vpop.f32.mrf.mxu0
    %v236 = vadd.f32 %v87, %v235
    %v237 = vpop.f32.mrf.mxu0
    %238 = vmatprep.mubr.bf16.mxu0 0
    %239 = vmatmul.mubr.bf16.gmra.mxu0 %v124
    %v240 = vpop.f32.mrf.mxu0
    %v241 = vadd.f32 %v87, %v240
    %v242 = vpop.f32.mrf.mxu0
    %v243 = vpop.f32.mrf.mxu0
    %v244 = vadd.f32 %v87, %v243
    %v245 = vpop.f32.mrf.mxu0
    %246 = vmatprep.mubr.bf16.mxu0 0
    %247 = vmatmul.mubr.bf16.gmra.mxu0 %v127
    %v248 = vpop.f32.mrf.mxu0
    %v249 = vadd.f32 %v87, %v248
    %v250 = vpop.f32.mrf.mxu0
    %v251 = vpop.f32.mrf.mxu0
    %v252 = vadd.f32 %v87, %v251
    %v253 = vpop.f32.mrf.mxu0
    %254 = vmatprep.mubr.bf16.mxu0 0
    %255 = vmatmul.mubr.bf16.gmra.mxu0 %v130
    %v256 = vpop.f32.mrf.mxu0
    %v257 = vadd.f32 %v87, %v256
    %v258 = vpop.f32.mrf.mxu0
    %v259 = vpop.f32.mrf.mxu0
    %v260 = vadd.f32 %v87, %v259
    %v261 = vpop.f32.mrf.mxu0
    %262 = vmatprep.mubr.bf16.mxu0 0
    %263 = vmatmul.mubr.bf16.gmra.mxu0 %v133
    %v264 = vpop.f32.mrf.mxu0
    %v265 = vadd.f32 %v87, %v264
    %v266 = vpop.f32.mrf.mxu0
    %v267 = vpop.f32.mrf.mxu0
    %v268 = vadd.f32 %v87, %v267
    %v269 = vpop.f32.mrf.mxu0
    %270 = vmatprep.mubr.bf16.mxu0 0
    %271 = vmatmul.mubr.bf16.gmra.mxu0 %v136
    %v272 = vpop.f32.mrf.mxu0
    %v273 = vadd.f32 %v87, %v272
    %v274 = vpop.f32.mrf.mxu0
    %v275 = vpop.f32.mrf.mxu0
    %v276 = vadd.f32 %v87, %v275
    %v277 = vpop.f32.mrf.mxu0
    %278 = vmatprep.mubr.bf16.mxu0 0
    %279 = vmatmul.mubr.bf16.gmra.mxu0 %v139
    %v280 = vpop.f32.mrf.mxu0
    %v281 = vadd.f32 %v87, %v280
    %v282 = vpop.f32.mrf.mxu0
    %v283 = vpop.f32.mrf.mxu0
    %v284 = vadd.f32 %v87, %v283
    %v285 = vpop.f32.mrf.mxu0
    %286 = vmatprep.mubr.bf16.mxu0 0
    %287 = vmatmul.mubr.bf16.gmra.mxu0 %v142
    %v288 = vpop.f32.mrf.mxu0
    %v289 = vadd.f32 %v87, %v288
    %v290 = vpop.f32.mrf.mxu0
    %v291 = vpop.f32.mrf.mxu0
    %v292 = vadd.f32 %v87, %v291
    %v293 = vpop.f32.mrf.mxu0
    %294 = vmatprep.mubr.bf16.mxu0 0
    %295 = vmatmul.mubr.bf16.gmra.mxu0 %v145
    %v296 = vpop.f32.mrf.mxu0
    %v297 = vadd.f32 %v87, %v296
    %v298 = vpop.f32.mrf.mxu0
    %v299 = vpop.f32.mrf.mxu0
    %v300 = vadd.f32 %v87, %v299
    %v301 = vpop.f32.mrf.mxu0
    %302 = vmatprep.mubr.bf16.mxu0 0
    %303 = vmatmul.mubr.bf16.gmra.mxu0 %v148
    %v304 = vpop.f32.mrf.mxu0
    %v305 = vadd.f32 %v87, %v304
    %v306 = vpop.f32.mrf.mxu0
    %v307 = vpop.f32.mrf.mxu0
    %v308 = vadd.f32 %v87, %v307
    %v309 = vpop.f32.mrf.mxu0
    %310 = vdwg.mxu0
    %v311 = vmax.f32 %v185, 0.0
    %v312 = vmax.f32 %v188, 0.0
    %v313 = vmax.f32 %v193, 0.0
    %v314 = vmax.f32 %v196, 0.0
    %v315 = vmax.f32 %v201, 0.0
    %v316 = vmax.f32 %v204, 0.0
    %v317 = vmax.f32 %v209, 0.0
    %v318 = vmax.f32 %v212, 0.0
    %v319 = vmax.f32 %v217, 0.0
    %v320 = vmax.f32 %v220, 0.0
    %v321 = vmax.f32 %v225, 0.0
    %v322 = vmax.f32 %v228, 0.0
    %v323 = vmax.f32 %v233, 0.0
    %v324 = vmax.f32 %v236, 0.0
    %v325 = vmax.f32 %v241, 0.0
    %v326 = vmax.f32 %v244, 0.0
    %v327 = vmax.f32 %v249, 0.0
    %v328 = vmax.f32 %v252, 0.0
    %v329 = vmax.f32 %v257, 0.0
    %v330 = vmax.f32 %v260, 0.0
    %v331 = vmax.f32 %v265, 0.0
    %v332 = vmax.f32 %v268, 0.0
    %v333 = vmax.f32 %v273, 0.0
    %v334 = vmax.f32 %v276, 0.0
    %v335 = vmax.f32 %v281, 0.0
    %v336 = vmax.f32 %v284, 0.0
    %v337 = vmax.f32 %v289, 0.0
    %v338 = vmax.f32 %v292, 0.0
    %v339 = vmax.f32 %v297, 0.0
    %v340 = vmax.f32 %v300, 0.0
    %v341 = vmax.f32 %v305, 0.0
    %v342 = vmax.f32 %v308, 0.0
    %v343 = vpack.c.bf16 %v312, %v311
    %v344 = vpack.c.bf16 %v314, %v313
    %v345 = vpack.c.bf16 %v316, %v315
    %v346 = vpack.c.bf16 %v318, %v317
    %v347 = vpack.c.bf16 %v320, %v319
    %v348 = vpack.c.bf16 %v322, %v321
    %v349 = vpack.c.bf16 %v324, %v323
    %v350 = vpack.c.bf16 %v326, %v325
    %v351 = vpack.c.bf16 %v328, %v327
    %v352 = vpack.c.bf16 %v330, %v329
    %v353 = vpack.c.bf16 %v332, %v331
    %v354 = vpack.c.bf16 %v334, %v333
    %v355 = vpack.c.bf16 %v336, %v335
    %v356 = vpack.c.bf16 %v338, %v337
    %v357 = vpack.c.bf16 %v340, %v339
    %v358 = vpack.c.bf16 %v342, %v341
    %v359 = vld [vmem:[%s3] sm:$0xf]
    %v360 = vld [vmem:[%s3 + $0x4] sm:$0xf]
    %v361 = vld [vmem:[%s3 + $0x8] sm:$0xf]
    %v362 = vld [vmem:[%s3 + $0xc] sm:$0xf]
    %v363 = vld [vmem:[%s3 + $0x10] sm:$0xf]
    %v364 = vld [vmem:[%s3 + $0x14] sm:$0xf]
    %v365 = vld [vmem:[%s3 + $0x18] sm:$0xf]
    %v366 = vld [vmem:[%s3 + $0x1c] sm:$0xf]
    %v367 = vld [vmem:[%s3 + $0x20] sm:$0xf]
    %v368 = vld [vmem:[%s3 + $0x24] sm:$0xf]
    %v369 = vld [vmem:[%s3 + $0x28] sm:$0xf]
    %v370 = vld [vmem:[%s3 + $0x2c] sm:$0xf]
    %v371 = vld [vmem:[%s3 + $0x30] sm:$0xf]
    %v372 = vld [vmem:[%s3 + $0x34] sm:$0xf]
    %v373 = vld [vmem:[%s3 + $0x38] sm:$0xf]
    %v374 = vld [vmem:[%s3 + $0x3c] sm:$0xf]
    %v375 = vld [vmem:[%s4] sm:$0x1]
    %v377 = vlaneseq
    %v378 = vshrl.u32 %v377, 7
    %v379 = vsub.s32 0, %v378
    %v380 = vrot.slane %v375, %v379
    %v398 = vunpack.c.l.b16 %v359
    %v399 = vunpack.c.l.b16 %v360
    %v400 = vunpack.c.l.b16 %v361
    %v401 = vunpack.c.l.b16 %v362
    %v402 = vunpack.c.l.b16 %v363
    %v403 = vunpack.c.l.b16 %v364
    %v404 = vunpack.c.l.b16 %v365
    %v405 = vunpack.c.l.b16 %v366
    %v406 = vunpack.c.l.b16 %v367
    %v407 = vunpack.c.l.b16 %v368
    %v408 = vunpack.c.l.b16 %v369
    %v409 = vunpack.c.l.b16 %v370
    %v410 = vunpack.c.l.b16 %v371
    %v411 = vunpack.c.l.b16 %v372
    %v412 = vunpack.c.l.b16 %v373
    %v413 = vunpack.c.l.b16 %v374
    %v414 = vpack.c.b16 %v399, %v398
    %v415 = vpack.c.b16 %v401, %v400
    %v416 = vpack.c.b16 %v403, %v402
    %v417 = vpack.c.b16 %v405, %v404
    %v418 = vpack.c.b16 %v407, %v406
    %v419 = vpack.c.b16 %v409, %v408
    %v420 = vpack.c.b16 %v411, %v410
    %v421 = vpack.c.b16 %v413, %v412
    %430 = vmatprep.subr.bf16.mxu0 0
    %431 = vmatpush1.bf16.msra.mxu0 %v421
    %432 = vmatprep.subr.bf16.mxu0 0
    %433 = vmatpush1.bf16.msra.mxu0 %v420
    %434 = vmatprep.subr.bf16.mxu0 0
    %435 = vmatpush1.bf16.msra.mxu0 %v419
    %436 = vmatprep.subr.bf16.mxu0 0
    %437 = vmatpush1.bf16.msra.mxu0 %v418
    %438 = vmatprep.subr.bf16.mxu0 0
    %439 = vmatpush1.bf16.msra.mxu0 %v417
    %440 = vmatprep.subr.bf16.mxu0 0
    %441 = vmatpush1.bf16.msra.mxu0 %v416
    %442 = vmatprep.subr.bf16.mxu0 0
    %443 = vmatpush1.bf16.msra.mxu0 %v415
    %444 = vmatprep.subr.bf16.mxu0 0
    %445 = vmatpush1.bf16.msra.mxu0 %v414
    %446 = vmatprep.subr.bf16.mxu0 0
    %447 = vmatpush2.bf16.msra.mxu0 0
    %448 = vmatprep.subr.bf16.mxu0 0
    %449 = vmatpush2.bf16.msra.mxu0 0
    %450 = vmatprep.subr.bf16.mxu0 0
    %451 = vmatpush2.bf16.msra.mxu0 0
    %452 = vmatprep.subr.bf16.mxu0 0
    %453 = vmatpush2.bf16.msra.mxu0 0
    %454 = vmatprep.subr.bf16.mxu0 0
    %455 = vmatpush2.bf16.msra.mxu0 0
    %456 = vmatprep.subr.bf16.mxu0 0
    %457 = vmatpush2.bf16.msra.mxu0 0
    %458 = vmatprep.subr.bf16.mxu0 0
    %459 = vmatpush2.bf16.msra.mxu0 0
    %460 = vmatprep.subr.bf16.mxu0 0
    %461 = vmatpush2.bf16.msra.mxu0 0
    %462 = vmatprep.mubr.bf16.mxu0 0
    %463 = vmatmul.mubr.bf16.gmra.mxu0 %v343
    %v464 = vpop.f32.mrf.mxu0
    %v465 = vadd.f32 %v380, %v464
    %v466 = vpop.f32.mrf.mxu0
    %v467 = vpop.f32.mrf.mxu0
    %v468 = vadd.f32 %v380, %v467
    %v469 = vpop.f32.mrf.mxu0
    %470 = vmatprep.mubr.bf16.mxu0 0
    %471 = vmatmul.mubr.bf16.gmra.mxu0 %v344
    %v472 = vpop.f32.mrf.mxu0
    %v473 = vadd.f32 %v380, %v472
    %v474 = vpop.f32.mrf.mxu0
    %v475 = vpop.f32.mrf.mxu0
    %v476 = vadd.f32 %v380, %v475
    %v477 = vpop.f32.mrf.mxu0
    %478 = vmatprep.mubr.bf16.mxu0 0
    %479 = vmatmul.mubr.bf16.gmra.mxu0 %v345
    %v480 = vpop.f32.mrf.mxu0
    %v481 = vadd.f32 %v380, %v480
    %v482 = vpop.f32.mrf.mxu0
    %v483 = vpop.f32.mrf.mxu0
    %v484 = vadd.f32 %v380, %v483
    %v485 = vpop.f32.mrf.mxu0
    %486 = vmatprep.mubr.bf16.mxu0 0
    %487 = vmatmul.mubr.bf16.gmra.mxu0 %v346
    %v488 = vpop.f32.mrf.mxu0
    %v489 = vadd.f32 %v380, %v488
    %v490 = vpop.f32.mrf.mxu0
    %v491 = vpop.f32.mrf.mxu0
    %v492 = vadd.f32 %v380, %v491
    %v493 = vpop.f32.mrf.mxu0
    %494 = vmatprep.mubr.bf16.mxu0 0
    %495 = vmatmul.mubr.bf16.gmra.mxu0 %v347
    %v496 = vpop.f32.mrf.mxu0
    %v497 = vadd.f32 %v380, %v496
    %v498 = vpop.f32.mrf.mxu0
    %v499 = vpop.f32.mrf.mxu0
    %v500 = vadd.f32 %v380, %v499
    %v501 = vpop.f32.mrf.mxu0
    %502 = vmatprep.mubr.bf16.mxu0 0
    %503 = vmatmul.mubr.bf16.gmra.mxu0 %v348
    %v504 = vpop.f32.mrf.mxu0
    %v505 = vadd.f32 %v380, %v504
    %v506 = vpop.f32.mrf.mxu0
    %v507 = vpop.f32.mrf.mxu0
    %v508 = vadd.f32 %v380, %v507
    %v509 = vpop.f32.mrf.mxu0
    %510 = vmatprep.mubr.bf16.mxu0 0
    %511 = vmatmul.mubr.bf16.gmra.mxu0 %v349
    %v512 = vpop.f32.mrf.mxu0
    %v513 = vadd.f32 %v380, %v512
    %v514 = vpop.f32.mrf.mxu0
    %v515 = vpop.f32.mrf.mxu0
    %v516 = vadd.f32 %v380, %v515
    %v517 = vpop.f32.mrf.mxu0
    %518 = vmatprep.mubr.bf16.mxu0 0
    %519 = vmatmul.mubr.bf16.gmra.mxu0 %v350
    %v520 = vpop.f32.mrf.mxu0
    %v521 = vadd.f32 %v380, %v520
    %v522 = vpop.f32.mrf.mxu0
    %v523 = vpop.f32.mrf.mxu0
    %v524 = vadd.f32 %v380, %v523
    %v525 = vpop.f32.mrf.mxu0
    %526 = vmatprep.mubr.bf16.mxu0 0
    %527 = vmatmul.mubr.bf16.gmra.mxu0 %v351
    %v528 = vpop.f32.mrf.mxu0
    %v529 = vadd.f32 %v380, %v528
    %v530 = vpop.f32.mrf.mxu0
    %v531 = vpop.f32.mrf.mxu0
    %v532 = vadd.f32 %v380, %v531
    %v533 = vpop.f32.mrf.mxu0
    %534 = vmatprep.mubr.bf16.mxu0 0
    %535 = vmatmul.mubr.bf16.gmra.mxu0 %v352
    %v536 = vpop.f32.mrf.mxu0
    %v537 = vadd.f32 %v380, %v536
    %v538 = vpop.f32.mrf.mxu0
    %v539 = vpop.f32.mrf.mxu0
    %v540 = vadd.f32 %v380, %v539
    %v541 = vpop.f32.mrf.mxu0
    %542 = vmatprep.mubr.bf16.mxu0 0
    %543 = vmatmul.mubr.bf16.gmra.mxu0 %v353
    %v544 = vpop.f32.mrf.mxu0
    %v545 = vadd.f32 %v380, %v544
    %v546 = vpop.f32.mrf.mxu0
    %v547 = vpop.f32.mrf.mxu0
    %v548 = vadd.f32 %v380, %v547
    %v549 = vpop.f32.mrf.mxu0
    %550 = vmatprep.mubr.bf16.mxu0 0
    %551 = vmatmul.mubr.bf16.gmra.mxu0 %v354
    %v552 = vpop.f32.mrf.mxu0
    %v553 = vadd.f32 %v380, %v552
    %v554 = vpop.f32.mrf.mxu0
    %v555 = vpop.f32.mrf.mxu0
    %v556 = vadd.f32 %v380, %v555
    %v557 = vpop.f32.mrf.mxu0
    %558 = vmatprep.mubr.bf16.mxu0 0
    %559 = vmatmul.mubr.bf16.gmra.mxu0 %v355
    %v560 = vpop.f32.mrf.mxu0
    %v561 = vadd.f32 %v380, %v560
    %v562 = vpop.f32.mrf.mxu0
    %v563 = vpop.f32.mrf.mxu0
    %v564 = vadd.f32 %v380, %v563
    %v565 = vpop.f32.mrf.mxu0
    %566 = vmatprep.mubr.bf16.mxu0 0
    %567 = vmatmul.mubr.bf16.gmra.mxu0 %v356
    %v568 = vpop.f32.mrf.mxu0
    %v569 = vadd.f32 %v380, %v568
    %v570 = vpop.f32.mrf.mxu0
    %v571 = vpop.f32.mrf.mxu0
    %v572 = vadd.f32 %v380, %v571
    %v573 = vpop.f32.mrf.mxu0
    %574 = vmatprep.mubr.bf16.mxu0 0
    %575 = vmatmul.mubr.bf16.gmra.mxu0 %v357
    %v576 = vpop.f32.mrf.mxu0
    %v577 = vadd.f32 %v380, %v576
    %v578 = vpop.f32.mrf.mxu0
    %v579 = vpop.f32.mrf.mxu0
    %v580 = vadd.f32 %v380, %v579
    %v581 = vpop.f32.mrf.mxu0
    %582 = vmatprep.mubr.bf16.mxu0 0
    %583 = vmatmul.mubr.bf16.gmra.mxu0 %v358
    %v584 = vpop.f32.mrf.mxu0
    %v585 = vadd.f32 %v380, %v584
    %v586 = vpop.f32.mrf.mxu0
    %v587 = vpop.f32.mrf.mxu0
    %v588 = vadd.f32 %v380, %v587
    %v589 = vpop.f32.mrf.mxu0
    %590 = vdwg.mxu0
    %v591 = vmax.f32 %v465, 0.0
    %v592 = vmax.f32 %v468, 0.0
    %v593 = vmax.f32 %v473, 0.0
    %v594 = vmax.f32 %v476, 0.0
    %v595 = vmax.f32 %v481, 0.0
    %v596 = vmax.f32 %v484, 0.0
    %v597 = vmax.f32 %v489, 0.0
    %v598 = vmax.f32 %v492, 0.0
    %v599 = vmax.f32 %v497, 0.0
    %v600 = vmax.f32 %v500, 0.0
    %v601 = vmax.f32 %v505, 0.0
    %v602 = vmax.f32 %v508, 0.0
    %v603 = vmax.f32 %v513, 0.0
    %v604 = vmax.f32 %v516, 0.0
    %v605 = vmax.f32 %v521, 0.0
    %v606 = vmax.f32 %v524, 0.0
    %v607 = vmax.f32 %v529, 0.0
    %v608 = vmax.f32 %v532, 0.0
    %v609 = vmax.f32 %v537, 0.0
    %v610 = vmax.f32 %v540, 0.0
    %v611 = vmax.f32 %v545, 0.0
    %v612 = vmax.f32 %v548, 0.0
    %v613 = vmax.f32 %v553, 0.0
    %v614 = vmax.f32 %v556, 0.0
    %v615 = vmax.f32 %v561, 0.0
    %v616 = vmax.f32 %v564, 0.0
    %v617 = vmax.f32 %v569, 0.0
    %v618 = vmax.f32 %v572, 0.0
    %v619 = vmax.f32 %v577, 0.0
    %v620 = vmax.f32 %v580, 0.0
    %v621 = vmax.f32 %v585, 0.0
    %v622 = vmax.f32 %v588, 0.0
    %v623 = vpack.c.bf16 %v592, %v591
    %v624 = vpack.c.bf16 %v594, %v593
    %v625 = vpack.c.bf16 %v596, %v595
    %v626 = vpack.c.bf16 %v598, %v597
    %v627 = vpack.c.bf16 %v600, %v599
    %v628 = vpack.c.bf16 %v602, %v601
    %v629 = vpack.c.bf16 %v604, %v603
    %v630 = vpack.c.bf16 %v606, %v605
    %v631 = vpack.c.bf16 %v608, %v607
    %v632 = vpack.c.bf16 %v610, %v609
    %v633 = vpack.c.bf16 %v612, %v611
    %v634 = vpack.c.bf16 %v614, %v613
    %v635 = vpack.c.bf16 %v616, %v615
    %v636 = vpack.c.bf16 %v618, %v617
    %v637 = vpack.c.bf16 %v620, %v619
    %v638 = vpack.c.bf16 %v622, %v621
    %v639 = vld [vmem:[%s5] sm:$0xf]
    %v640 = vld [vmem:[%s5 + $0x4] sm:$0xf]
    %v641 = vld [vmem:[%s5 + $0x8] sm:$0xf]
    %v642 = vld [vmem:[%s5 + $0xc] sm:$0xf]
    %v643 = vld [vmem:[%s5 + $0x10] sm:$0xf]
    %v644 = vld [vmem:[%s5 + $0x14] sm:$0xf]
    %v645 = vld [vmem:[%s5 + $0x18] sm:$0xf]
    %v646 = vld [vmem:[%s5 + $0x1c] sm:$0xf]
    %v647 = vld [vmem:[%s5 + $0x20] sm:$0xf]
    %v648 = vld [vmem:[%s5 + $0x24] sm:$0xf]
    %v649 = vld [vmem:[%s5 + $0x28] sm:$0xf]
    %v650 = vld [vmem:[%s5 + $0x2c] sm:$0xf]
    %v651 = vld [vmem:[%s5 + $0x30] sm:$0xf]
    %v652 = vld [vmem:[%s5 + $0x34] sm:$0xf]
    %v653 = vld [vmem:[%s5 + $0x38] sm:$0xf]
    %v654 = vld [vmem:[%s5 + $0x3c] sm:$0xf]
    %v655 = vld [vmem:[%s6] sm:$0x1]
    %v657 = vlaneseq
    %v658 = vshrl.u32 %v657, 7
    %v659 = vsub.s32 0, %v658
    %v660 = vrot.slane %v655, %v659
    %v678 = vunpack.c.l.b16 %v639
    %v679 = vunpack.c.l.b16 %v640
    %v680 = vunpack.c.l.b16 %v641
    %v681 = vunpack.c.l.b16 %v642
    %v682 = vunpack.c.l.b16 %v643
    %v683 = vunpack.c.l.b16 %v644
    %v684 = vunpack.c.l.b16 %v645
    %v685 = vunpack.c.l.b16 %v646
    %v686 = vunpack.c.l.b16 %v647
    %v687 = vunpack.c.l.b16 %v648
    %v688 = vunpack.c.l.b16 %v649
    %v689 = vunpack.c.l.b16 %v650
    %v690 = vunpack.c.l.b16 %v651
    %v691 = vunpack.c.l.b16 %v652
    %v692 = vunpack.c.l.b16 %v653
    %v693 = vunpack.c.l.b16 %v654
    %v694 = vpack.c.b16 %v679, %v678
    %v695 = vpack.c.b16 %v681, %v680
    %v696 = vpack.c.b16 %v683, %v682
    %v697 = vpack.c.b16 %v685, %v684
    %v698 = vpack.c.b16 %v687, %v686
    %v699 = vpack.c.b16 %v689, %v688
    %v700 = vpack.c.b16 %v691, %v690
    %v701 = vpack.c.b16 %v693, %v692
    %710 = vmatprep.subr.bf16.mxu0 0
    %711 = vmatpush1.bf16.msra.mxu0 %v701
    %712 = vmatprep.subr.bf16.mxu0 0
    %713 = vmatpush1.bf16.msra.mxu0 %v700
    %714 = vmatprep.subr.bf16.mxu0 0
    %715 = vmatpush1.bf16.msra.mxu0 %v699
    %716 = vmatprep.subr.bf16.mxu0 0
    %717 = vmatpush1.bf16.msra.mxu0 %v698
    %718 = vmatprep.subr.bf16.mxu0 0
    %719 = vmatpush1.bf16.msra.mxu0 %v697
    %720 = vmatprep.subr.bf16.mxu0 0
    %721 = vmatpush1.bf16.msra.mxu0 %v696
    %722 = vmatprep.subr.bf16.mxu0 0
    %723 = vmatpush1.bf16.msra.mxu0 %v695
    %724 = vmatprep.subr.bf16.mxu0 0
    %725 = vmatpush1.bf16.msra.mxu0 %v694
    %726 = vmatprep.subr.bf16.mxu0 0
    %727 = vmatpush2.bf16.msra.mxu0 0
    %728 = vmatprep.subr.bf16.mxu0 0
    %729 = vmatpush2.bf16.msra.mxu0 0
    %730 = vmatprep.subr.bf16.mxu0 0
    %731 = vmatpush2.bf16.msra.mxu0 0
    %732 = vmatprep.subr.bf16.mxu0 0
    %733 = vmatpush2.bf16.msra.mxu0 0
    %734 = vmatprep.subr.bf16.mxu0 0
    %735 = vmatpush2.bf16.msra.mxu0 0
    %736 = vmatprep.subr.bf16.mxu0 0
    %737 = vmatpush2.bf16.msra.mxu0 0
    %738 = vmatprep.subr.bf16.mxu0 0
    %739 = vmatpush2.bf16.msra.mxu0 0
    %740 = vmatprep.subr.bf16.mxu0 0
    %741 = vmatpush2.bf16.msra.mxu0 0
    %742 = vmatprep.mubr.bf16.mxu0 0
    %743 = vmatmul.mubr.bf16.gmra.mxu0 %v623
    %v744 = vpop.f32.mrf.mxu0
    %v745 = vadd.f32 %v660, %v744
    %v746 = vpop.f32.mrf.mxu0
    %v747 = vpop.f32.mrf.mxu0
    %v748 = vadd.f32 %v660, %v747
    %v749 = vpop.f32.mrf.mxu0
    %750 = vmatprep.mubr.bf16.mxu0 0
    %751 = vmatmul.mubr.bf16.gmra.mxu0 %v624
    %v752 = vpop.f32.mrf.mxu0
    %v753 = vadd.f32 %v660, %v752
    %v754 = vpop.f32.mrf.mxu0
    %v755 = vpop.f32.mrf.mxu0
    %v756 = vadd.f32 %v660, %v755
    %v757 = vpop.f32.mrf.mxu0
    %758 = vmatprep.mubr.bf16.mxu0 0
    %759 = vmatmul.mubr.bf16.gmra.mxu0 %v625
    %v760 = vpop.f32.mrf.mxu0
    %v761 = vadd.f32 %v660, %v760
    %v762 = vpop.f32.mrf.mxu0
    %v763 = vpop.f32.mrf.mxu0
    %v764 = vadd.f32 %v660, %v763
    %v765 = vpop.f32.mrf.mxu0
    %766 = vmatprep.mubr.bf16.mxu0 0
    %767 = vmatmul.mubr.bf16.gmra.mxu0 %v626
    %v768 = vpop.f32.mrf.mxu0
    %v769 = vadd.f32 %v660, %v768
    %v770 = vpop.f32.mrf.mxu0
    %v771 = vpop.f32.mrf.mxu0
    %v772 = vadd.f32 %v660, %v771
    %v773 = vpop.f32.mrf.mxu0
    %774 = vmatprep.mubr.bf16.mxu0 0
    %775 = vmatmul.mubr.bf16.gmra.mxu0 %v627
    %v776 = vpop.f32.mrf.mxu0
    %v777 = vadd.f32 %v660, %v776
    %v778 = vpop.f32.mrf.mxu0
    %v779 = vpop.f32.mrf.mxu0
    %v780 = vadd.f32 %v660, %v779
    %v781 = vpop.f32.mrf.mxu0
    %782 = vmatprep.mubr.bf16.mxu0 0
    %783 = vmatmul.mubr.bf16.gmra.mxu0 %v628
    %v784 = vpop.f32.mrf.mxu0
    %v785 = vadd.f32 %v660, %v784
    %v786 = vpop.f32.mrf.mxu0
    %v787 = vpop.f32.mrf.mxu0
    %v788 = vadd.f32 %v660, %v787
    %v789 = vpop.f32.mrf.mxu0
    %790 = vmatprep.mubr.bf16.mxu0 0
    %791 = vmatmul.mubr.bf16.gmra.mxu0 %v629
    %v792 = vpop.f32.mrf.mxu0
    %v793 = vadd.f32 %v660, %v792
    %v794 = vpop.f32.mrf.mxu0
    %v795 = vpop.f32.mrf.mxu0
    %v796 = vadd.f32 %v660, %v795
    %v797 = vpop.f32.mrf.mxu0
    %798 = vmatprep.mubr.bf16.mxu0 0
    %799 = vmatmul.mubr.bf16.gmra.mxu0 %v630
    %v800 = vpop.f32.mrf.mxu0
    %v801 = vadd.f32 %v660, %v800
    %v802 = vpop.f32.mrf.mxu0
    %v803 = vpop.f32.mrf.mxu0
    %v804 = vadd.f32 %v660, %v803
    %v805 = vpop.f32.mrf.mxu0
    %806 = vmatprep.mubr.bf16.mxu0 0
    %807 = vmatmul.mubr.bf16.gmra.mxu0 %v631
    %v808 = vpop.f32.mrf.mxu0
    %v809 = vadd.f32 %v660, %v808
    %v810 = vpop.f32.mrf.mxu0
    %v811 = vpop.f32.mrf.mxu0
    %v812 = vadd.f32 %v660, %v811
    %v813 = vpop.f32.mrf.mxu0
    %814 = vmatprep.mubr.bf16.mxu0 0
    %815 = vmatmul.mubr.bf16.gmra.mxu0 %v632
    %v816 = vpop.f32.mrf.mxu0
    %v817 = vadd.f32 %v660, %v816
    %v818 = vpop.f32.mrf.mxu0
    %v819 = vpop.f32.mrf.mxu0
    %v820 = vadd.f32 %v660, %v819
    %v821 = vpop.f32.mrf.mxu0
    %822 = vmatprep.mubr.bf16.mxu0 0
    %823 = vmatmul.mubr.bf16.gmra.mxu0 %v633
    %v824 = vpop.f32.mrf.mxu0
    %v825 = vadd.f32 %v660, %v824
    %v826 = vpop.f32.mrf.mxu0
    %v827 = vpop.f32.mrf.mxu0
    %v828 = vadd.f32 %v660, %v827
    %v829 = vpop.f32.mrf.mxu0
    %830 = vmatprep.mubr.bf16.mxu0 0
    %831 = vmatmul.mubr.bf16.gmra.mxu0 %v634
    %v832 = vpop.f32.mrf.mxu0
    %v833 = vadd.f32 %v660, %v832
    %v834 = vpop.f32.mrf.mxu0
    %v835 = vpop.f32.mrf.mxu0
    %v836 = vadd.f32 %v660, %v835
    %v837 = vpop.f32.mrf.mxu0
    %838 = vmatprep.mubr.bf16.mxu0 0
    %839 = vmatmul.mubr.bf16.gmra.mxu0 %v635
    %v840 = vpop.f32.mrf.mxu0
    %v841 = vadd.f32 %v660, %v840
    %v842 = vpop.f32.mrf.mxu0
    %v843 = vpop.f32.mrf.mxu0
    %v844 = vadd.f32 %v660, %v843
    %v845 = vpop.f32.mrf.mxu0
    %846 = vmatprep.mubr.bf16.mxu0 0
    %847 = vmatmul.mubr.bf16.gmra.mxu0 %v636
    %v848 = vpop.f32.mrf.mxu0
    %v849 = vadd.f32 %v660, %v848
    %v850 = vpop.f32.mrf.mxu0
    %v851 = vpop.f32.mrf.mxu0
    %v852 = vadd.f32 %v660, %v851
    %v853 = vpop.f32.mrf.mxu0
    %854 = vmatprep.mubr.bf16.mxu0 0
    %855 = vmatmul.mubr.bf16.gmra.mxu0 %v637
    %v856 = vpop.f32.mrf.mxu0
    %v857 = vadd.f32 %v660, %v856
    %v858 = vpop.f32.mrf.mxu0
    %v859 = vpop.f32.mrf.mxu0
    %v860 = vadd.f32 %v660, %v859
    %v861 = vpop.f32.mrf.mxu0
    %862 = vmatprep.mubr.bf16.mxu0 0
    %863 = vmatmul.mubr.bf16.gmra.mxu0 %v638
    %v864 = vpop.f32.mrf.mxu0
    %v865 = vadd.f32 %v660, %v864
    %v866 = vpop.f32.mrf.mxu0
    %v867 = vpop.f32.mrf.mxu0
    %v868 = vadd.f32 %v660, %v867
    %v869 = vpop.f32.mrf.mxu0
    %870 = vdwg.mxu0
    %v871 = vpack.c.bf16 %v748, %v745
    %v872 = vpack.c.bf16 %v756, %v753
    %v873 = vpack.c.bf16 %v764, %v761
    %v874 = vpack.c.bf16 %v772, %v769
    %v875 = vpack.c.bf16 %v780, %v777
    %v876 = vpack.c.bf16 %v788, %v785
    %v877 = vpack.c.bf16 %v796, %v793
    %v878 = vpack.c.bf16 %v804, %v801
    %v879 = vpack.c.bf16 %v812, %v809
    %v880 = vpack.c.bf16 %v820, %v817
    %v881 = vpack.c.bf16 %v828, %v825
    %v882 = vpack.c.bf16 %v836, %v833
    %v883 = vpack.c.bf16 %v844, %v841
    %v884 = vpack.c.bf16 %v852, %v849
    %v885 = vpack.c.bf16 %v860, %v857
    %v886 = vpack.c.bf16 %v868, %v865
    %v903 = vunpack.c.l.b16 %v871
    %v904 = vunpack.c.h.b16 %v871
    %v905 = vunpack.c.l.b16 %v872
    %v906 = vunpack.c.h.b16 %v872
    %v907 = vunpack.c.l.b16 %v873
    %v908 = vunpack.c.h.b16 %v873
    %v909 = vunpack.c.l.b16 %v874
    %v910 = vunpack.c.h.b16 %v874
    %v911 = vunpack.c.l.b16 %v875
    %v912 = vunpack.c.h.b16 %v875
    %v913 = vunpack.c.l.b16 %v876
    %v914 = vunpack.c.h.b16 %v876
    %v915 = vunpack.c.l.b16 %v877
    %v916 = vunpack.c.h.b16 %v877
    %v917 = vunpack.c.l.b16 %v878
    %v918 = vunpack.c.h.b16 %v878
    %v919 = vunpack.c.l.b16 %v879
    %v920 = vunpack.c.h.b16 %v879
    %v921 = vunpack.c.l.b16 %v880
    %v922 = vunpack.c.h.b16 %v880
    %v923 = vunpack.c.l.b16 %v881
    %v924 = vunpack.c.h.b16 %v881
    %v925 = vunpack.c.l.b16 %v882
    %v926 = vunpack.c.h.b16 %v882
    %v927 = vunpack.c.l.b16 %v883
    %v928 = vunpack.c.h.b16 %v883
    %v929 = vunpack.c.l.b16 %v884
    %v930 = vunpack.c.h.b16 %v884
    %v931 = vunpack.c.l.b16 %v885
    %v932 = vunpack.c.h.b16 %v885
    %v933 = vunpack.c.l.b16 %v886
    %v934 = vunpack.c.h.b16 %v886
    %v935 = vpack.c.b16 %v903, %v903
    %v936 = vpack.c.b16 %v904, %v904
    %v937 = vpack.c.b16 %v905, %v905
    %v938 = vpack.c.b16 %v906, %v906
    %v939 = vpack.c.b16 %v907, %v907
    %v940 = vpack.c.b16 %v908, %v908
    %v941 = vpack.c.b16 %v909, %v909
    %v942 = vpack.c.b16 %v910, %v910
    %v943 = vpack.c.b16 %v911, %v911
    %v944 = vpack.c.b16 %v912, %v912
    %v945 = vpack.c.b16 %v913, %v913
    %v946 = vpack.c.b16 %v914, %v914
    %v947 = vpack.c.b16 %v915, %v915
    %v948 = vpack.c.b16 %v916, %v916
    %v949 = vpack.c.b16 %v917, %v917
    %v950 = vpack.c.b16 %v918, %v918
    %v951 = vpack.c.b16 %v919, %v919
    %v952 = vpack.c.b16 %v920, %v920
    %v953 = vpack.c.b16 %v921, %v921
    %v954 = vpack.c.b16 %v922, %v922
    %v955 = vpack.c.b16 %v923, %v923
    %v956 = vpack.c.b16 %v924, %v924
    %v957 = vpack.c.b16 %v925, %v925
    %v958 = vpack.c.b16 %v926, %v926
    %v959 = vpack.c.b16 %v927, %v927
    %v960 = vpack.c.b16 %v928, %v928
    %v961 = vpack.c.b16 %v929, %v929
    %v962 = vpack.c.b16 %v930, %v930
    %v963 = vpack.c.b16 %v931, %v931
    %v964 = vpack.c.b16 %v932, %v932
    %v965 = vpack.c.b16 %v933, %v933
    %v966 = vpack.c.b16 %v934, %v934
    %999 = vst [vmem:[#allocation2] sm:$0xf] %v935
    %1000 = vst [vmem:[#allocation2 + $0x4] sm:$0xf] %v936
    %1001 = vst [vmem:[#allocation2 + $0x8] sm:$0xf] %v937
    %1002 = vst [vmem:[#allocation2 + $0xc] sm:$0xf] %v938
    %1003 = vst [vmem:[#allocation2 + $0x10] sm:$0xf] %v939
    %1004 = vst [vmem:[#allocation2 + $0x14] sm:$0xf] %v940
    %1005 = vst [vmem:[#allocation2 + $0x18] sm:$0xf] %v941
    %1006 = vst [vmem:[#allocation2 + $0x1c] sm:$0xf] %v942
    %1007 = vst [vmem:[#allocation2 + $0x20] sm:$0xf] %v943
    %1008 = vst [vmem:[#allocation2 + $0x24] sm:$0xf] %v944
    %1009 = vst [vmem:[#allocation2 + $0x28] sm:$0xf] %v945
    %1010 = vst [vmem:[#allocation2 + $0x2c] sm:$0xf] %v946
    %1011 = vst [vmem:[#allocation2 + $0x30] sm:$0xf] %v947
    %1012 = vst [vmem:[#allocation2 + $0x34] sm:$0xf] %v948
    %1013 = vst [vmem:[#allocation2 + $0x38] sm:$0xf] %v949
    %1014 = vst [vmem:[#allocation2 + $0x3c] sm:$0xf] %v950
    %1015 = vst [vmem:[#allocation2 + $0x40] sm:$0xf] %v951
    %1016 = vst [vmem:[#allocation2 + $0x44] sm:$0xf] %v952
    %1017 = vst [vmem:[#allocation2 + $0x48] sm:$0xf] %v953
    %1018 = vst [vmem:[#allocation2 + $0x4c] sm:$0xf] %v954
    %1019 = vst [vmem:[#allocation2 + $0x50] sm:$0xf] %v955
    %1020 = vst [vmem:[#allocation2 + $0x54] sm:$0xf] %v956
    %1021 = vst [vmem:[#allocation2 + $0x58] sm:$0xf] %v957
    %1022 = vst [vmem:[#allocation2 + $0x5c] sm:$0xf] %v958
    %1023 = vst [vmem:[#allocation2 + $0x60] sm:$0xf] %v959
    %1024 = vst [vmem:[#allocation2 + $0x64] sm:$0xf] %v960
    %1025 = vst [vmem:[#allocation2 + $0x68] sm:$0xf] %v961
    %1026 = vst [vmem:[#allocation2 + $0x6c] sm:$0xf] %v962
    %1027 = vst [vmem:[#allocation2 + $0x70] sm:$0xf] %v963
    %1028 = vst [vmem:[#allocation2 + $0x74] sm:$0xf] %v964
    %1029 = vst [vmem:[#allocation2 + $0x78] sm:$0xf] %v965
    %1030 = vst [vmem:[#allocation2 + $0x7c] sm:$0xf] %v966
    %v1031 = vlaneseq
    %v1032 = vand.u32 %v1031, 127
    %vm1033 = vcmp.lt.s32.totalorder %v1032, 16
    %v1034 = vsel %vm1033, %v745, -inf
    %v1035 = vsel %vm1033, %v748, -inf
    %v1036 = vsel %vm1033, %v753, -inf
    %v1037 = vsel %vm1033, %v756, -inf
    %v1038 = vsel %vm1033, %v761, -inf
    %v1039 = vsel %vm1033, %v764, -inf
    %v1040 = vsel %vm1033, %v769, -inf
    %v1041 = vsel %vm1033, %v772, -inf
    %v1042 = vsel %vm1033, %v777, -inf
    %v1043 = vsel %vm1033, %v780, -inf
    %v1044 = vsel %vm1033, %v785, -inf
    %v1045 = vsel %vm1033, %v788, -inf
    %v1046 = vsel %vm1033, %v793, -inf
    %v1047 = vsel %vm1033, %v796, -inf
    %v1048 = vsel %vm1033, %v801, -inf
    %v1049 = vsel %vm1033, %v804, -inf
    %v1050 = vsel %vm1033, %v809, -inf
    %v1051 = vsel %vm1033, %v812, -inf
    %v1052 = vsel %vm1033, %v817, -inf
    %v1053 = vsel %vm1033, %v820, -inf
    %v1054 = vsel %vm1033, %v825, -inf
    %v1055 = vsel %vm1033, %v828, -inf
    %v1056 = vsel %vm1033, %v833, -inf
    %v1057 = vsel %vm1033, %v836, -inf
    %v1058 = vsel %vm1033, %v841, -inf
    %v1059 = vsel %vm1033, %v844, -inf
    %v1060 = vsel %vm1033, %v849, -inf
    %v1061 = vsel %vm1033, %v852, -inf
    %v1062 = vsel %vm1033, %v857, -inf
    %v1063 = vsel %vm1033, %v860, -inf
    %v1064 = vsel %vm1033, %v865, -inf
    %v1065 = vsel %vm1033, %v868, -inf
    %1066 = vmax.xlane.f32.xlu0 %v1034
    %v1067 = vpop.xlane.xlu0 %1066
    %1068 = vmax.xlane.f32.xlu0 %v1035
    %v1069 = vpop.xlane.xlu0 %1068
    %1070 = vmax.xlane.f32.xlu0 %v1036
    %v1071 = vpop.xlane.xlu0 %1070
    %1072 = vmax.xlane.f32.xlu0 %v1037
    %v1073 = vpop.xlane.xlu0 %1072
    %1074 = vmax.xlane.f32.xlu0 %v1038
    %v1075 = vpop.xlane.xlu0 %1074
    %1076 = vmax.xlane.f32.xlu0 %v1039
    %v1077 = vpop.xlane.xlu0 %1076
    %1078 = vmax.xlane.f32.xlu0 %v1040
    %v1079 = vpop.xlane.xlu0 %1078
    %1080 = vmax.xlane.f32.xlu0 %v1041
    %v1081 = vpop.xlane.xlu0 %1080
    %1082 = vmax.xlane.f32.xlu0 %v1042
    %v1083 = vpop.xlane.xlu0 %1082
    %1084 = vmax.xlane.f32.xlu0 %v1043
    %v1085 = vpop.xlane.xlu0 %1084
    %1086 = vmax.xlane.f32.xlu0 %v1044
    %v1087 = vpop.xlane.xlu0 %1086
    %1088 = vmax.xlane.f32.xlu0 %v1045
    %v1089 = vpop.xlane.xlu0 %1088
    %1090 = vmax.xlane.f32.xlu0 %v1046
    %v1091 = vpop.xlane.xlu0 %1090
    %1092 = vmax.xlane.f32.xlu0 %v1047
    %v1093 = vpop.xlane.xlu0 %1092
    %1094 = vmax.xlane.f32.xlu0 %v1048
    %v1095 = vpop.xlane.xlu0 %1094
    %1096 = vmax.xlane.f32.xlu0 %v1049
    %v1097 = vpop.xlane.xlu0 %1096
    %1098 = vmax.xlane.f32.xlu0 %v1050
    %v1099 = vpop.xlane.xlu0 %1098
    %1100 = vmax.xlane.f32.xlu0 %v1051
    %v1101 = vpop.xlane.xlu0 %1100
    %1102 = vmax.xlane.f32.xlu0 %v1052
    %v1103 = vpop.xlane.xlu0 %1102
    %1104 = vmax.xlane.f32.xlu0 %v1053
    %v1105 = vpop.xlane.xlu0 %1104
    %1106 = vmax.xlane.f32.xlu0 %v1054
    %v1107 = vpop.xlane.xlu0 %1106
    %1108 = vmax.xlane.f32.xlu0 %v1055
    %v1109 = vpop.xlane.xlu0 %1108
    %1110 = vmax.xlane.f32.xlu0 %v1056
    %v1111 = vpop.xlane.xlu0 %1110
    %1112 = vmax.xlane.f32.xlu0 %v1057
    %v1113 = vpop.xlane.xlu0 %1112
    %1114 = vmax.xlane.f32.xlu0 %v1058
    %v1115 = vpop.xlane.xlu0 %1114
    %1116 = vmax.xlane.f32.xlu0 %v1059
    %v1117 = vpop.xlane.xlu0 %1116
    %1118 = vmax.xlane.f32.xlu0 %v1060
    %v1119 = vpop.xlane.xlu0 %1118
    %1120 = vmax.xlane.f32.xlu0 %v1061
    %v1121 = vpop.xlane.xlu0 %1120
    %1122 = vmax.xlane.f32.xlu0 %v1062
    %v1123 = vpop.xlane.xlu0 %1122
    %1124 = vmax.xlane.f32.xlu0 %v1063
    %v1125 = vpop.xlane.xlu0 %1124
    %1126 = vmax.xlane.f32.xlu0 %v1064
    %v1127 = vpop.xlane.xlu0 %1126
    %1128 = vmax.xlane.f32.xlu0 %v1065
    %v1129 = vpop.xlane.xlu0 %1128
    %vm1130 = vcmp.eq.f32.partialorder %v1034, %v1067
    %vm1131 = vcmp.eq.f32.partialorder %v1035, %v1069
    %vm1132 = vcmp.eq.f32.partialorder %v1036, %v1071
    %vm1133 = vcmp.eq.f32.partialorder %v1037, %v1073
    %vm1134 = vcmp.eq.f32.partialorder %v1038, %v1075
    %vm1135 = vcmp.eq.f32.partialorder %v1039, %v1077
    %vm1136 = vcmp.eq.f32.partialorder %v1040, %v1079
    %vm1137 = vcmp.eq.f32.partialorder %v1041, %v1081
    %vm1138 = vcmp.eq.f32.partialorder %v1042, %v1083
    %vm1139 = vcmp.eq.f32.partialorder %v1043, %v1085
    %vm1140 = vcmp.eq.f32.partialorder %v1044, %v1087
    %vm1141 = vcmp.eq.f32.partialorder %v1045, %v1089
    %vm1142 = vcmp.eq.f32.partialorder %v1046, %v1091
    %vm1143 = vcmp.eq.f32.partialorder %v1047, %v1093
    %vm1144 = vcmp.eq.f32.partialorder %v1048, %v1095
    %vm1145 = vcmp.eq.f32.partialorder %v1049, %v1097
    %vm1146 = vcmp.eq.f32.partialorder %v1050, %v1099
    %vm1147 = vcmp.eq.f32.partialorder %v1051, %v1101
    %vm1148 = vcmp.eq.f32.partialorder %v1052, %v1103
    %vm1149 = vcmp.eq.f32.partialorder %v1053, %v1105
    %vm1150 = vcmp.eq.f32.partialorder %v1054, %v1107
    %vm1151 = vcmp.eq.f32.partialorder %v1055, %v1109
    %vm1152 = vcmp.eq.f32.partialorder %v1056, %v1111
    %vm1153 = vcmp.eq.f32.partialorder %v1057, %v1113
    %vm1154 = vcmp.eq.f32.partialorder %v1058, %v1115
    %vm1155 = vcmp.eq.f32.partialorder %v1059, %v1117
    %vm1156 = vcmp.eq.f32.partialorder %v1060, %v1119
    %vm1157 = vcmp.eq.f32.partialorder %v1061, %v1121
    %vm1158 = vcmp.eq.f32.partialorder %v1062, %v1123
    %vm1159 = vcmp.eq.f32.partialorder %v1063, %v1125
    %vm1160 = vcmp.eq.f32.partialorder %v1064, %v1127
    %vm1161 = vcmp.eq.f32.partialorder %v1065, %v1129
    %v1162 = vsel %vm1130, %v1032, 128
    %v1163 = vsel %vm1131, %v1032, 128
    %v1164 = vsel %vm1132, %v1032, 128
    %v1165 = vsel %vm1133, %v1032, 128
    %v1166 = vsel %vm1134, %v1032, 128
    %v1167 = vsel %vm1135, %v1032, 128
    %v1168 = vsel %vm1136, %v1032, 128
    %v1169 = vsel %vm1137, %v1032, 128
    %v1170 = vsel %vm1138, %v1032, 128
    %v1171 = vsel %vm1139, %v1032, 128
    %v1172 = vsel %vm1140, %v1032, 128
    %v1173 = vsel %vm1141, %v1032, 128
    %v1174 = vsel %vm1142, %v1032, 128
    %v1175 = vsel %vm1143, %v1032, 128
    %v1176 = vsel %vm1144, %v1032, 128
    %v1177 = vsel %vm1145, %v1032, 128
    %v1178 = vsel %vm1146, %v1032, 128
    %v1179 = vsel %vm1147, %v1032, 128
    %v1180 = vsel %vm1148, %v1032, 128
    %v1181 = vsel %vm1149, %v1032, 128
    %v1182 = vsel %vm1150, %v1032, 128
    %v1183 = vsel %vm1151, %v1032, 128
    %v1184 = vsel %vm1152, %v1032, 128
    %v1185 = vsel %vm1153, %v1032, 128
    %v1186 = vsel %vm1154, %v1032, 128
    %v1187 = vsel %vm1155, %v1032, 128
    %v1188 = vsel %vm1156, %v1032, 128
    %v1189 = vsel %vm1157, %v1032, 128
    %v1190 = vsel %vm1158, %v1032, 128
    %v1191 = vsel %vm1159, %v1032, 128
    %v1192 = vsel %vm1160, %v1032, 128
    %v1193 = vsel %vm1161, %v1032, 128
    %v1194 = vand.u32 %v1162, 65535
    %v1195 = vshra.s32 %v1162, 16
    %v1196 = vcvt.s32.f32 %v1194
    %v1197 = vcvt.s32.f32 %v1195
    %1198 = vmin.xlane.f32.xlu0 %v1197
    %v1199 = vpop.xlane.xlu0 %1198
    %vm1200 = vcmp.eq.f32.partialorder %v1197, %v1199
    %v1201 = vsel %vm1200, %v1196, inf
    %1202 = vmin.xlane.f32.xlu0 %v1201
    %v1203 = vpop.xlane.xlu0 %1202
    %v1204 = vcvt.f32.s32 %v1203
    %v1205 = vcvt.f32.s32 %v1199
    %v1206 = vshll.u32 %v1205, 16
    %v1207 = vadd.s32 %v1206, %v1204
    %v1208 = vand.u32 %v1163, 65535
    %v1209 = vshra.s32 %v1163, 16
    %v1210 = vcvt.s32.f32 %v1208
    %v1211 = vcvt.s32.f32 %v1209
    %1212 = vmin.xlane.f32.xlu0 %v1211
    %v1213 = vpop.xlane.xlu0 %1212
    %vm1214 = vcmp.eq.f32.partialorder %v1211, %v1213
    %v1215 = vsel %vm1214, %v1210, inf
    %1216 = vmin.xlane.f32.xlu0 %v1215
    %v1217 = vpop.xlane.xlu0 %1216
    %v1218 = vcvt.f32.s32 %v1217
    %v1219 = vcvt.f32.s32 %v1213
    %v1220 = vshll.u32 %v1219, 16
    %v1221 = vadd.s32 %v1220, %v1218
    %v1222 = vand.u32 %v1164, 65535
    %v1223 = vshra.s32 %v1164, 16
    %v1224 = vcvt.s32.f32 %v1222
    %v1225 = vcvt.s32.f32 %v1223
    %1226 = vmin.xlane.f32.xlu0 %v1225
    %v1227 = vpop.xlane.xlu0 %1226
    %vm1228 = vcmp.eq.f32.partialorder %v1225, %v1227
    %v1229 = vsel %vm1228, %v1224, inf
    %1230 = vmin.xlane.f32.xlu0 %v1229
    %v1231 = vpop.xlane.xlu0 %1230
    %v1232 = vcvt.f32.s32 %v1231
    %v1233 = vcvt.f32.s32 %v1227
    %v1234 = vshll.u32 %v1233, 16
    %v1235 = vadd.s32 %v1234, %v1232
    %v1236 = vand.u32 %v1165, 65535
    %v1237 = vshra.s32 %v1165, 16
    %v1238 = vcvt.s32.f32 %v1236
    %v1239 = vcvt.s32.f32 %v1237
    %1240 = vmin.xlane.f32.xlu0 %v1239
    %v1241 = vpop.xlane.xlu0 %1240
    %vm1242 = vcmp.eq.f32.partialorder %v1239, %v1241
    %v1243 = vsel %vm1242, %v1238, inf
    %1244 = vmin.xlane.f32.xlu0 %v1243
    %v1245 = vpop.xlane.xlu0 %1244
    %v1246 = vcvt.f32.s32 %v1245
    %v1247 = vcvt.f32.s32 %v1241
    %v1248 = vshll.u32 %v1247, 16
    %v1249 = vadd.s32 %v1248, %v1246
    %v1250 = vand.u32 %v1166, 65535
    %v1251 = vshra.s32 %v1166, 16
    %v1252 = vcvt.s32.f32 %v1250
    %v1253 = vcvt.s32.f32 %v1251
    %1254 = vmin.xlane.f32.xlu0 %v1253
    %v1255 = vpop.xlane.xlu0 %1254
    %vm1256 = vcmp.eq.f32.partialorder %v1253, %v1255
    %v1257 = vsel %vm1256, %v1252, inf
    %1258 = vmin.xlane.f32.xlu0 %v1257
    %v1259 = vpop.xlane.xlu0 %1258
    %v1260 = vcvt.f32.s32 %v1259
    %v1261 = vcvt.f32.s32 %v1255
    %v1262 = vshll.u32 %v1261, 16
    %v1263 = vadd.s32 %v1262, %v1260
    %v1264 = vand.u32 %v1167, 65535
    %v1265 = vshra.s32 %v1167, 16
    %v1266 = vcvt.s32.f32 %v1264
    %v1267 = vcvt.s32.f32 %v1265
    %1268 = vmin.xlane.f32.xlu0 %v1267
    %v1269 = vpop.xlane.xlu0 %1268
    %vm1270 = vcmp.eq.f32.partialorder %v1267, %v1269
    %v1271 = vsel %vm1270, %v1266, inf
    %1272 = vmin.xlane.f32.xlu0 %v1271
    %v1273 = vpop.xlane.xlu0 %1272
    %v1274 = vcvt.f32.s32 %v1273
    %v1275 = vcvt.f32.s32 %v1269
    %v1276 = vshll.u32 %v1275, 16
    %v1277 = vadd.s32 %v1276, %v1274
    %v1278 = vand.u32 %v1168, 65535
    %v1279 = vshra.s32 %v1168, 16
    %v1280 = vcvt.s32.f32 %v1278
    %v1281 = vcvt.s32.f32 %v1279
    %1282 = vmin.xlane.f32.xlu0 %v1281
    %v1283 = vpop.xlane.xlu0 %1282
    %vm1284 = vcmp.eq.f32.partialorder %v1281, %v1283
    %v1285 = vsel %vm1284, %v1280, inf
    %1286 = vmin.xlane.f32.xlu0 %v1285
    %v1287 = vpop.xlane.xlu0 %1286
    %v1288 = vcvt.f32.s32 %v1287
    %v1289 = vcvt.f32.s32 %v1283
    %v1290 = vshll.u32 %v1289, 16
    %v1291 = vadd.s32 %v1290, %v1288
    %v1292 = vand.u32 %v1169, 65535
    %v1293 = vshra.s32 %v1169, 16
    %v1294 = vcvt.s32.f32 %v1292
    %v1295 = vcvt.s32.f32 %v1293
    %1296 = vmin.xlane.f32.xlu0 %v1295
    %v1297 = vpop.xlane.xlu0 %1296
    %vm1298 = vcmp.eq.f32.partialorder %v1295, %v1297
    %v1299 = vsel %vm1298, %v1294, inf
    %1300 = vmin.xlane.f32.xlu0 %v1299
    %v1301 = vpop.xlane.xlu0 %1300
    %v1302 = vcvt.f32.s32 %v1301
    %v1303 = vcvt.f32.s32 %v1297
    %v1304 = vshll.u32 %v1303, 16
    %v1305 = vadd.s32 %v1304, %v1302
    %v1306 = vand.u32 %v1170, 65535
    %v1307 = vshra.s32 %v1170, 16
    %v1308 = vcvt.s32.f32 %v1306
    %v1309 = vcvt.s32.f32 %v1307
    %1310 = vmin.xlane.f32.xlu0 %v1309
    %v1311 = vpop.xlane.xlu0 %1310
    %vm1312 = vcmp.eq.f32.partialorder %v1309, %v1311
    %v1313 = vsel %vm1312, %v1308, inf
    %1314 = vmin.xlane.f32.xlu0 %v1313
    %v1315 = vpop.xlane.xlu0 %1314
    %v1316 = vcvt.f32.s32 %v1315
    %v1317 = vcvt.f32.s32 %v1311
    %v1318 = vshll.u32 %v1317, 16
    %v1319 = vadd.s32 %v1318, %v1316
    %v1320 = vand.u32 %v1171, 65535
    %v1321 = vshra.s32 %v1171, 16
    %v1322 = vcvt.s32.f32 %v1320
    %v1323 = vcvt.s32.f32 %v1321
    %1324 = vmin.xlane.f32.xlu0 %v1323
    %v1325 = vpop.xlane.xlu0 %1324
    %vm1326 = vcmp.eq.f32.partialorder %v1323, %v1325
    %v1327 = vsel %vm1326, %v1322, inf
    %1328 = vmin.xlane.f32.xlu0 %v1327
    %v1329 = vpop.xlane.xlu0 %1328
    %v1330 = vcvt.f32.s32 %v1329
    %v1331 = vcvt.f32.s32 %v1325
    %v1332 = vshll.u32 %v1331, 16
    %v1333 = vadd.s32 %v1332, %v1330
    %v1334 = vand.u32 %v1172, 65535
    %v1335 = vshra.s32 %v1172, 16
    %v1336 = vcvt.s32.f32 %v1334
    %v1337 = vcvt.s32.f32 %v1335
    %1338 = vmin.xlane.f32.xlu0 %v1337
    %v1339 = vpop.xlane.xlu0 %1338
    %vm1340 = vcmp.eq.f32.partialorder %v1337, %v1339
    %v1341 = vsel %vm1340, %v1336, inf
    %1342 = vmin.xlane.f32.xlu0 %v1341
    %v1343 = vpop.xlane.xlu0 %1342
    %v1344 = vcvt.f32.s32 %v1343
    %v1345 = vcvt.f32.s32 %v1339
    %v1346 = vshll.u32 %v1345, 16
    %v1347 = vadd.s32 %v1346, %v1344
    %v1348 = vand.u32 %v1173, 65535
    %v1349 = vshra.s32 %v1173, 16
    %v1350 = vcvt.s32.f32 %v1348
    %v1351 = vcvt.s32.f32 %v1349
    %1352 = vmin.xlane.f32.xlu0 %v1351
    %v1353 = vpop.xlane.xlu0 %1352
    %vm1354 = vcmp.eq.f32.partialorder %v1351, %v1353
    %v1355 = vsel %vm1354, %v1350, inf
    %1356 = vmin.xlane.f32.xlu0 %v1355
    %v1357 = vpop.xlane.xlu0 %1356
    %v1358 = vcvt.f32.s32 %v1357
    %v1359 = vcvt.f32.s32 %v1353
    %v1360 = vshll.u32 %v1359, 16
    %v1361 = vadd.s32 %v1360, %v1358
    %v1362 = vand.u32 %v1174, 65535
    %v1363 = vshra.s32 %v1174, 16
    %v1364 = vcvt.s32.f32 %v1362
    %v1365 = vcvt.s32.f32 %v1363
    %1366 = vmin.xlane.f32.xlu0 %v1365
    %v1367 = vpop.xlane.xlu0 %1366
    %vm1368 = vcmp.eq.f32.partialorder %v1365, %v1367
    %v1369 = vsel %vm1368, %v1364, inf
    %1370 = vmin.xlane.f32.xlu0 %v1369
    %v1371 = vpop.xlane.xlu0 %1370
    %v1372 = vcvt.f32.s32 %v1371
    %v1373 = vcvt.f32.s32 %v1367
    %v1374 = vshll.u32 %v1373, 16
    %v1375 = vadd.s32 %v1374, %v1372
    %v1376 = vand.u32 %v1175, 65535
    %v1377 = vshra.s32 %v1175, 16
    %v1378 = vcvt.s32.f32 %v1376
    %v1379 = vcvt.s32.f32 %v1377
    %1380 = vmin.xlane.f32.xlu0 %v1379
    %v1381 = vpop.xlane.xlu0 %1380
    %vm1382 = vcmp.eq.f32.partialorder %v1379, %v1381
    %v1383 = vsel %vm1382, %v1378, inf
    %1384 = vmin.xlane.f32.xlu0 %v1383
    %v1385 = vpop.xlane.xlu0 %1384
    %v1386 = vcvt.f32.s32 %v1385
    %v1387 = vcvt.f32.s32 %v1381
    %v1388 = vshll.u32 %v1387, 16
    %v1389 = vadd.s32 %v1388, %v1386
    %v1390 = vand.u32 %v1176, 65535
    %v1391 = vshra.s32 %v1176, 16
    %v1392 = vcvt.s32.f32 %v1390
    %v1393 = vcvt.s32.f32 %v1391
    %1394 = vmin.xlane.f32.xlu0 %v1393
    %v1395 = vpop.xlane.xlu0 %1394
    %vm1396 = vcmp.eq.f32.partialorder %v1393, %v1395
    %v1397 = vsel %vm1396, %v1392, inf
    %1398 = vmin.xlane.f32.xlu0 %v1397
    %v1399 = vpop.xlane.xlu0 %1398
    %v1400 = vcvt.f32.s32 %v1399
    %v1401 = vcvt.f32.s32 %v1395
    %v1402 = vshll.u32 %v1401, 16
    %v1403 = vadd.s32 %v1402, %v1400
    %v1404 = vand.u32 %v1177, 65535
    %v1405 = vshra.s32 %v1177, 16
    %v1406 = vcvt.s32.f32 %v1404
    %v1407 = vcvt.s32.f32 %v1405
    %1408 = vmin.xlane.f32.xlu0 %v1407
    %v1409 = vpop.xlane.xlu0 %1408
    %vm1410 = vcmp.eq.f32.partialorder %v1407, %v1409
    %v1411 = vsel %vm1410, %v1406, inf
    %1412 = vmin.xlane.f32.xlu0 %v1411
    %v1413 = vpop.xlane.xlu0 %1412
    %v1414 = vcvt.f32.s32 %v1413
    %v1415 = vcvt.f32.s32 %v1409
    %v1416 = vshll.u32 %v1415, 16
    %v1417 = vadd.s32 %v1416, %v1414
    %v1418 = vand.u32 %v1178, 65535
    %v1419 = vshra.s32 %v1178, 16
    %v1420 = vcvt.s32.f32 %v1418
    %v1421 = vcvt.s32.f32 %v1419
    %1422 = vmin.xlane.f32.xlu0 %v1421
    %v1423 = vpop.xlane.xlu0 %1422
    %vm1424 = vcmp.eq.f32.partialorder %v1421, %v1423
    %v1425 = vsel %vm1424, %v1420, inf
    %1426 = vmin.xlane.f32.xlu0 %v1425
    %v1427 = vpop.xlane.xlu0 %1426
    %v1428 = vcvt.f32.s32 %v1427
    %v1429 = vcvt.f32.s32 %v1423
    %v1430 = vshll.u32 %v1429, 16
    %v1431 = vadd.s32 %v1430, %v1428
    %v1432 = vand.u32 %v1179, 65535
    %v1433 = vshra.s32 %v1179, 16
    %v1434 = vcvt.s32.f32 %v1432
    %v1435 = vcvt.s32.f32 %v1433
    %1436 = vmin.xlane.f32.xlu0 %v1435
    %v1437 = vpop.xlane.xlu0 %1436
    %vm1438 = vcmp.eq.f32.partialorder %v1435, %v1437
    %v1439 = vsel %vm1438, %v1434, inf
    %1440 = vmin.xlane.f32.xlu0 %v1439
    %v1441 = vpop.xlane.xlu0 %1440
    %v1442 = vcvt.f32.s32 %v1441
    %v1443 = vcvt.f32.s32 %v1437
    %v1444 = vshll.u32 %v1443, 16
    %v1445 = vadd.s32 %v1444, %v1442
    %v1446 = vand.u32 %v1180, 65535
    %v1447 = vshra.s32 %v1180, 16
    %v1448 = vcvt.s32.f32 %v1446
    %v1449 = vcvt.s32.f32 %v1447
    %1450 = vmin.xlane.f32.xlu0 %v1449
    %v1451 = vpop.xlane.xlu0 %1450
    %vm1452 = vcmp.eq.f32.partialorder %v1449, %v1451
    %v1453 = vsel %vm1452, %v1448, inf
    %1454 = vmin.xlane.f32.xlu0 %v1453
    %v1455 = vpop.xlane.xlu0 %1454
    %v1456 = vcvt.f32.s32 %v1455
    %v1457 = vcvt.f32.s32 %v1451
    %v1458 = vshll.u32 %v1457, 16
    %v1459 = vadd.s32 %v1458, %v1456
    %v1460 = vand.u32 %v1181, 65535
    %v1461 = vshra.s32 %v1181, 16
    %v1462 = vcvt.s32.f32 %v1460
    %v1463 = vcvt.s32.f32 %v1461
    %1464 = vmin.xlane.f32.xlu0 %v1463
    %v1465 = vpop.xlane.xlu0 %1464
    %vm1466 = vcmp.eq.f32.partialorder %v1463, %v1465
    %v1467 = vsel %vm1466, %v1462, inf
    %1468 = vmin.xlane.f32.xlu0 %v1467
    %v1469 = vpop.xlane.xlu0 %1468
    %v1470 = vcvt.f32.s32 %v1469
    %v1471 = vcvt.f32.s32 %v1465
    %v1472 = vshll.u32 %v1471, 16
    %v1473 = vadd.s32 %v1472, %v1470
    %v1474 = vand.u32 %v1182, 65535
    %v1475 = vshra.s32 %v1182, 16
    %v1476 = vcvt.s32.f32 %v1474
    %v1477 = vcvt.s32.f32 %v1475
    %1478 = vmin.xlane.f32.xlu0 %v1477
    %v1479 = vpop.xlane.xlu0 %1478
    %vm1480 = vcmp.eq.f32.partialorder %v1477, %v1479
    %v1481 = vsel %vm1480, %v1476, inf
    %1482 = vmin.xlane.f32.xlu0 %v1481
    %v1483 = vpop.xlane.xlu0 %1482
    %v1484 = vcvt.f32.s32 %v1483
    %v1485 = vcvt.f32.s32 %v1479
    %v1486 = vshll.u32 %v1485, 16
    %v1487 = vadd.s32 %v1486, %v1484
    %v1488 = vand.u32 %v1183, 65535
    %v1489 = vshra.s32 %v1183, 16
    %v1490 = vcvt.s32.f32 %v1488
    %v1491 = vcvt.s32.f32 %v1489
    %1492 = vmin.xlane.f32.xlu0 %v1491
    %v1493 = vpop.xlane.xlu0 %1492
    %vm1494 = vcmp.eq.f32.partialorder %v1491, %v1493
    %v1495 = vsel %vm1494, %v1490, inf
    %1496 = vmin.xlane.f32.xlu0 %v1495
    %v1497 = vpop.xlane.xlu0 %1496
    %v1498 = vcvt.f32.s32 %v1497
    %v1499 = vcvt.f32.s32 %v1493
    %v1500 = vshll.u32 %v1499, 16
    %v1501 = vadd.s32 %v1500, %v1498
    %v1502 = vand.u32 %v1184, 65535
    %v1503 = vshra.s32 %v1184, 16
    %v1504 = vcvt.s32.f32 %v1502
    %v1505 = vcvt.s32.f32 %v1503
    %1506 = vmin.xlane.f32.xlu0 %v1505
    %v1507 = vpop.xlane.xlu0 %1506
    %vm1508 = vcmp.eq.f32.partialorder %v1505, %v1507
    %v1509 = vsel %vm1508, %v1504, inf
    %1510 = vmin.xlane.f32.xlu0 %v1509
    %v1511 = vpop.xlane.xlu0 %1510
    %v1512 = vcvt.f32.s32 %v1511
    %v1513 = vcvt.f32.s32 %v1507
    %v1514 = vshll.u32 %v1513, 16
    %v1515 = vadd.s32 %v1514, %v1512
    %v1516 = vand.u32 %v1185, 65535
    %v1517 = vshra.s32 %v1185, 16
    %v1518 = vcvt.s32.f32 %v1516
    %v1519 = vcvt.s32.f32 %v1517
    %1520 = vmin.xlane.f32.xlu0 %v1519
    %v1521 = vpop.xlane.xlu0 %1520
    %vm1522 = vcmp.eq.f32.partialorder %v1519, %v1521
    %v1523 = vsel %vm1522, %v1518, inf
    %1524 = vmin.xlane.f32.xlu0 %v1523
    %v1525 = vpop.xlane.xlu0 %1524
    %v1526 = vcvt.f32.s32 %v1525
    %v1527 = vcvt.f32.s32 %v1521
    %v1528 = vshll.u32 %v1527, 16
    %v1529 = vadd.s32 %v1528, %v1526
    %v1530 = vand.u32 %v1186, 65535
    %v1531 = vshra.s32 %v1186, 16
    %v1532 = vcvt.s32.f32 %v1530
    %v1533 = vcvt.s32.f32 %v1531
    %1534 = vmin.xlane.f32.xlu0 %v1533
    %v1535 = vpop.xlane.xlu0 %1534
    %vm1536 = vcmp.eq.f32.partialorder %v1533, %v1535
    %v1537 = vsel %vm1536, %v1532, inf
    %1538 = vmin.xlane.f32.xlu0 %v1537
    %v1539 = vpop.xlane.xlu0 %1538
    %v1540 = vcvt.f32.s32 %v1539
    %v1541 = vcvt.f32.s32 %v1535
    %v1542 = vshll.u32 %v1541, 16
    %v1543 = vadd.s32 %v1542, %v1540
    %v1544 = vand.u32 %v1187, 65535
    %v1545 = vshra.s32 %v1187, 16
    %v1546 = vcvt.s32.f32 %v1544
    %v1547 = vcvt.s32.f32 %v1545
    %1548 = vmin.xlane.f32.xlu0 %v1547
    %v1549 = vpop.xlane.xlu0 %1548
    %vm1550 = vcmp.eq.f32.partialorder %v1547, %v1549
    %v1551 = vsel %vm1550, %v1546, inf
    %1552 = vmin.xlane.f32.xlu0 %v1551
    %v1553 = vpop.xlane.xlu0 %1552
    %v1554 = vcvt.f32.s32 %v1553
    %v1555 = vcvt.f32.s32 %v1549
    %v1556 = vshll.u32 %v1555, 16
    %v1557 = vadd.s32 %v1556, %v1554
    %v1558 = vand.u32 %v1188, 65535
    %v1559 = vshra.s32 %v1188, 16
    %v1560 = vcvt.s32.f32 %v1558
    %v1561 = vcvt.s32.f32 %v1559
    %1562 = vmin.xlane.f32.xlu0 %v1561
    %v1563 = vpop.xlane.xlu0 %1562
    %vm1564 = vcmp.eq.f32.partialorder %v1561, %v1563
    %v1565 = vsel %vm1564, %v1560, inf
    %1566 = vmin.xlane.f32.xlu0 %v1565
    %v1567 = vpop.xlane.xlu0 %1566
    %v1568 = vcvt.f32.s32 %v1567
    %v1569 = vcvt.f32.s32 %v1563
    %v1570 = vshll.u32 %v1569, 16
    %v1571 = vadd.s32 %v1570, %v1568
    %v1572 = vand.u32 %v1189, 65535
    %v1573 = vshra.s32 %v1189, 16
    %v1574 = vcvt.s32.f32 %v1572
    %v1575 = vcvt.s32.f32 %v1573
    %1576 = vmin.xlane.f32.xlu0 %v1575
    %v1577 = vpop.xlane.xlu0 %1576
    %vm1578 = vcmp.eq.f32.partialorder %v1575, %v1577
    %v1579 = vsel %vm1578, %v1574, inf
    %1580 = vmin.xlane.f32.xlu0 %v1579
    %v1581 = vpop.xlane.xlu0 %1580
    %v1582 = vcvt.f32.s32 %v1581
    %v1583 = vcvt.f32.s32 %v1577
    %v1584 = vshll.u32 %v1583, 16
    %v1585 = vadd.s32 %v1584, %v1582
    %v1586 = vand.u32 %v1190, 65535
    %v1587 = vshra.s32 %v1190, 16
    %v1588 = vcvt.s32.f32 %v1586
    %v1589 = vcvt.s32.f32 %v1587
    %1590 = vmin.xlane.f32.xlu0 %v1589
    %v1591 = vpop.xlane.xlu0 %1590
    %vm1592 = vcmp.eq.f32.partialorder %v1589, %v1591
    %v1593 = vsel %vm1592, %v1588, inf
    %1594 = vmin.xlane.f32.xlu0 %v1593
    %v1595 = vpop.xlane.xlu0 %1594
    %v1596 = vcvt.f32.s32 %v1595
    %v1597 = vcvt.f32.s32 %v1591
    %v1598 = vshll.u32 %v1597, 16
    %v1599 = vadd.s32 %v1598, %v1596
    %v1600 = vand.u32 %v1191, 65535
    %v1601 = vshra.s32 %v1191, 16
    %v1602 = vcvt.s32.f32 %v1600
    %v1603 = vcvt.s32.f32 %v1601
    %1604 = vmin.xlane.f32.xlu0 %v1603
    %v1605 = vpop.xlane.xlu0 %1604
    %vm1606 = vcmp.eq.f32.partialorder %v1603, %v1605
    %v1607 = vsel %vm1606, %v1602, inf
    %1608 = vmin.xlane.f32.xlu0 %v1607
    %v1609 = vpop.xlane.xlu0 %1608
    %v1610 = vcvt.f32.s32 %v1609
    %v1611 = vcvt.f32.s32 %v1605
    %v1612 = vshll.u32 %v1611, 16
    %v1613 = vadd.s32 %v1612, %v1610
    %v1614 = vand.u32 %v1192, 65535
    %v1615 = vshra.s32 %v1192, 16
    %v1616 = vcvt.s32.f32 %v1614
    %v1617 = vcvt.s32.f32 %v1615
    %1618 = vmin.xlane.f32.xlu0 %v1617
    %v1619 = vpop.xlane.xlu0 %1618
    %vm1620 = vcmp.eq.f32.partialorder %v1617, %v1619
    %v1621 = vsel %vm1620, %v1616, inf
    %1622 = vmin.xlane.f32.xlu0 %v1621
    %v1623 = vpop.xlane.xlu0 %1622
    %v1624 = vcvt.f32.s32 %v1623
    %v1625 = vcvt.f32.s32 %v1619
    %v1626 = vshll.u32 %v1625, 16
    %v1627 = vadd.s32 %v1626, %v1624
    %v1628 = vand.u32 %v1193, 65535
    %v1629 = vshra.s32 %v1193, 16
    %v1630 = vcvt.s32.f32 %v1628
    %v1631 = vcvt.s32.f32 %v1629
    %1632 = vmin.xlane.f32.xlu0 %v1631
    %v1633 = vpop.xlane.xlu0 %1632
    %vm1634 = vcmp.eq.f32.partialorder %v1631, %v1633
    %v1635 = vsel %vm1634, %v1630, inf
    %1636 = vmin.xlane.f32.xlu0 %v1635
    %v1637 = vpop.xlane.xlu0 %1636
    %v1638 = vcvt.f32.s32 %v1637
    %v1639 = vcvt.f32.s32 %v1633
    %v1640 = vshll.u32 %v1639, 16
    %v1641 = vadd.s32 %v1640, %v1638
    %vm1642 = vcmask 7168
    %1643 = vst.msk [vmem:[%s8] sm:$0xff] %vm1642, %v1207
    %1644 = vst.msk [vmem:[%s8 + $0x8] sm:$0xff] %vm1642, %v1221
    %1645 = vst.msk [vmem:[%s8 + $0x10] sm:$0xff] %vm1642, %v1235
    %1646 = vst.msk [vmem:[%s8 + $0x18] sm:$0xff] %vm1642, %v1249
    %1647 = vst.msk [vmem:[%s8 + $0x20] sm:$0xff] %vm1642, %v1263
    %1648 = vst.msk [vmem:[%s8 + $0x28] sm:$0xff] %vm1642, %v1277
    %1649 = vst.msk [vmem:[%s8 + $0x30] sm:$0xff] %vm1642, %v1291
    %1650 = vst.msk [vmem:[%s8 + $0x38] sm:$0xff] %vm1642, %v1305
    %1651 = vst.msk [vmem:[%s8 + $0x40] sm:$0xff] %vm1642, %v1319
    %1652 = vst.msk [vmem:[%s8 + $0x48] sm:$0xff] %vm1642, %v1333
    %1653 = vst.msk [vmem:[%s8 + $0x50] sm:$0xff] %vm1642, %v1347
    %1654 = vst.msk [vmem:[%s8 + $0x58] sm:$0xff] %vm1642, %v1361
    %1655 = vst.msk [vmem:[%s8 + $0x60] sm:$0xff] %vm1642, %v1375
    %1656 = vst.msk [vmem:[%s8 + $0x68] sm:$0xff] %vm1642, %v1389
    %1657 = vst.msk [vmem:[%s8 + $0x70] sm:$0xff] %vm1642, %v1403
    %1658 = vst.msk [vmem:[%s8 + $0x78] sm:$0xff] %vm1642, %v1417
    %1659 = vst.msk [vmem:[%s8 + $0x80] sm:$0xff] %vm1642, %v1431
    %1660 = vst.msk [vmem:[%s8 + $0x88] sm:$0xff] %vm1642, %v1445
    %1661 = vst.msk [vmem:[%s8 + $0x90] sm:$0xff] %vm1642, %v1459
    %1662 = vst.msk [vmem:[%s8 + $0x98] sm:$0xff] %vm1642, %v1473
    %1663 = vst.msk [vmem:[%s8 + $0xa0] sm:$0xff] %vm1642, %v1487
    %1664 = vst.msk [vmem:[%s8 + $0xa8] sm:$0xff] %vm1642, %v1501
    %1665 = vst.msk [vmem:[%s8 + $0xb0] sm:$0xff] %vm1642, %v1515
    %1666 = vst.msk [vmem:[%s8 + $0xb8] sm:$0xff] %vm1642, %v1529
    %1667 = vst.msk [vmem:[%s8 + $0xc0] sm:$0xff] %vm1642, %v1543
    %1668 = vst.msk [vmem:[%s8 + $0xc8] sm:$0xff] %vm1642, %v1557
    %1669 = vst.msk [vmem:[%s8 + $0xd0] sm:$0xff] %vm1642, %v1571
    %1670 = vst.msk [vmem:[%s8 + $0xd8] sm:$0xff] %vm1642, %v1585
    %1671 = vst.msk [vmem:[%s8 + $0xe0] sm:$0xff] %vm1642, %v1599
    %1672 = vst.msk [vmem:[%s8 + $0xe8] sm:$0xff] %vm1642, %v1613
    %1673 = vst.msk [vmem:[%s8 + $0xf0] sm:$0xff] %vm1642, %v1627
    %1674 = vst.msk [vmem:[%s8 + $0xf8] sm:$0xff] %vm1642, %v1641
    // Predicated region
    $region30: #{tpu_custom_call.1} parent=1 // pred_check
      _
    $region31: #{tpu_custom_call.1} parent=1 // pred_check_branch
      %1676 = sbr.rel (0) target = $region33
    $region32: #{tpu_custom_call.1} parent=1 // pred_region
      %s1678 = ssub.s32 2048, 2048
      %1679 = vsyncadd [#allocation3], %s1678
      %s1680 = sshll.u32 [#allocation2], 4
      %s1681 = int_to_ptr.vmem [resolvable:$true] %s1680
      %1686 = dma.vmem_to_hbm [thread:$0]  %s1681, 2048, %s7, [#allocation3], 64, 64, 4
    $region33: #{tpu_custom_call.1} parent=1 // pred_fallthru
      _
    // Predicated region
    $region34: #{tpu_custom_call.1} parent=1 // pred_check
      _
    $region35: #{tpu_custom_call.1} parent=1 // pred_check_branch
      %1688 = sbr.rel (0) target = $region37
    $region36: #{tpu_custom_call.1} parent=1 // pred_region
      _
    $region37: #{tpu_custom_call.1} parent=1 // pred_fallthru
      _
    // Predicated region
    $region38: #{tpu_custom_call.1} parent=1 // pred_check
      _
    $region39: #{tpu_custom_call.1} parent=1 // pred_check_branch
      %1690 = sbr.rel (0) target = $region41
    $region40: #{tpu_custom_call.1} parent=1 // pred_region
      %1691 = dma.done [#allocation3], 2048
    $region41: #{tpu_custom_call.1} parent=1 // pred_fallthru
      _
    // Predicated region
    $region42: #{tpu_custom_call.1} parent=1 // pred_check
      _
    $region43: #{tpu_custom_call.1} parent=1 // pred_check_branch
      %1693 = sbr.rel (0) target = $region45
    $region44: #{tpu_custom_call.1} parent=1 // pred_region
      _
    $region45: #{tpu_custom_call.1} parent=1 // pred_fallthru
      _
    %1694 = vsyncpa [#allocation3], 1

</llo_original>
